<compile_context>
chip_gen: v7x
topology: tpu7x:2x2x1
jax: 0.10.0
libtpu: 0.0.40
codegen_flags: <defaults>
</compile_context>

<pallas_src>
import functools

import numpy as np
import jax
import jax.numpy as jnp
from jax import lax
from jax.experimental import pallas as pl
from jax.experimental.pallas import tpu as pltpu


# ---------------------------------------------------------------------------
# Kernel
# ---------------------------------------------------------------------------

def basic_block_kernel(x_ref, masks_ref, vmask_ref, w1_ref, g1_ref, b1_ref,
                       w2_ref, g2_ref, b2_ref, gmat_ref, o_ref, h_ref,
                       *, nb, s_pad, width, eps, compute_dtype, padded):
    lanes = nb * s_pad
    masks = masks_ref[...]                      # (9C, lanes), compute dtype
    gmat = gmat_ref[...]                        # (C, C) f32, pre-scaled 1/(Cpg*S)

    def conv3x3(x_f32, w_ref):
        """3x3 'same' conv for all nb lane-packed images as ONE matmul."""
        cols = []
        for dh in (-1, 0, 1):
            for dw in (-1, 0, 1):
                shift = dh * width + dw
                if shift == 0:
                    cols.append(x_f32)
                else:
                    # shifted[p] = x[(p + shift) % lanes]; every wrap /
                    # cross-image / cross-pad position is zeroed by `masks`.
                    cols.append(pltpu.roll(x_f32, (-shift) % lanes, axis=1))
        patches = jnp.concatenate(cols, axis=0).astype(compute_dtype) * masks
        w = w_ref[...].astype(compute_dtype)
        return jnp.dot(w, patches, preferred_element_type=jnp.float32)

    def group_combine(col):
        # (C,C) @ (C,1) done as a lane-aligned (C,C) @ (C,128) matmul: the
        # column is replicated on lanes, the result column sliced back out.
        col_b = jnp.broadcast_to(col, (col.shape[0], 128))
        return jnp.dot(gmat, col_b, preferred_element_type=jnp.float32)[:, :1]

    def group_norm(y_img, gamma, beta, vmask_img):
        # Reduce over lanes first, then tiny group-matrix combines (C,1).
        colsum = jnp.sum(y_img, axis=1, keepdims=True)           # (C, 1)
        mean = group_combine(colsum)                              # group mean
        centered = y_img - mean
        sq = centered * centered
        if padded:
            sq = sq * vmask_img       # exclude pad lanes from the variance
        var = group_combine(jnp.sum(sq, axis=1, keepdims=True))
        scale = lax.rsqrt(var + eps) * gamma                      # gamma folded
        return centered * scale + beta

    g1 = g1_ref[...]
    b1 = b1_ref[...]
    g2 = g2_ref[...]
    b2 = b2_ref[...]

    # conv1 over all packed images in one matmul, then per-image GN + ReLU.
    y = conv3x3(x_ref[...].astype(jnp.float32), w1_ref)           # (C, lanes) f32
    for img in range(nb):                       # small, bounded static unroll
        sl = slice(img * s_pad, (img + 1) * s_pad)
        vm = vmask_ref[:, sl] if padded else None
        h_img = group_norm(y[:, sl], g1, b1, vm)
        h_ref[:, sl] = jnp.maximum(h_img, 0.0)

    # conv2, then per-image GN + identity residual + ReLU.
    z = conv3x3(h_ref[...], w2_ref)                               # (C, lanes) f32
    for img in range(nb):
        sl = slice(img * s_pad, (img + 1) * s_pad)
        vm = vmask_ref[:, sl] if padded else None
        out_img = group_norm(z[:, sl], g2, b2, vm)
        out_img = out_img + x_ref[:, sl].astype(jnp.float32)      # f32 residual
        o_ref[:, sl] = jnp.maximum(out_img, 0.0).astype(o_ref.dtype)
    # TODO(synk): stride>1 / downsample projection branch not implemented
    #             (this block is used with downsample=None, stride=1).


# ---------------------------------------------------------------------------
# Wrapper helpers
# ---------------------------------------------------------------------------

def _make_tap_masks(h, w, s_pad):
    """(9, s_pad) f32 per-image masks: 1 where the shifted source pixel is a
    valid in-image pixel; 0 at image borders (per tap) and at all pad lanes."""
    s = h * w
    ii, jj = np.meshgrid(np.arange(h), np.arange(w), indexing="ij")
    masks = np.zeros((9, s_pad), np.float32)
    t = 0
    for dh in (-1, 0, 1):
        for dw in (-1, 0, 1):
            valid = ((ii + dh >= 0) & (ii + dh < h) &
                     (jj + dw >= 0) & (jj + dw < w))
            masks[t, :s] = valid.astype(np.float32).reshape(-1)
            t += 1
    return masks


def _make_group_matrix(channels, num_groups, spatial):
    """(C, C) group-membership matrix pre-scaled by 1/(Cpg * true_spatial)."""
    cpg = channels // num_groups
    cid = np.arange(channels)
    same = (cid[:, None] // cpg) == (cid[None, :] // cpg)
    return jnp.asarray(same.astype(np.float32) / float(cpg * spatial))


def _num_tensorcores_per_chip():
    """Heuristic: v5e/v6e expose one TensorCore per Pallas device; newer
    parts (v7x) have two that dimension_semantics=("parallel",) shards over."""
    try:
        kind = jax.devices()[0].device_kind.lower()
    except Exception:
        return 2
    if "lite" in kind or "v5e" in kind or "v6" in kind:
        return 1
    return 2


def _pick_batch_block(n, c, s_pad, io_bytes, compute_bytes, num_tc,
                      vmem_budget_bytes=8 << 20, max_unroll=32):
    """Images packed per grid step: largest divisor of n whose per-step VMEM
    footprint fits the budget, capped so the per-image GroupNorm unroll stays
    bounded and (on multi-TensorCore chips) so the grid keeps >= num_tc
    evenly divisible steps for balanced megacore sharding."""
    per_img = s_pad * (
        2 * c * io_bytes              # x block (double-buffered)
        + 2 * c * io_bytes            # out block (double-buffered)
        + 2 * 9 * c * compute_bytes   # tap masks (counted double-buffered)
        + 2 * 4                       # valid-lane mask row
        + 9 * c * compute_bytes       # im2col patches intermediate
        + 5 * c * 4)                  # conv outputs / GN scratch / residual (f32)
    nb_cap = max(1, int(vmem_budget_bytes // max(per_img, 1)))
    nb_cap = min(nb_cap, max_unroll, n)
    if num_tc > 1:
        nb_cap = min(nb_cap, max(1, n // num_tc))
    divisors = [d for d in range(1, nb_cap + 1) if n % d == 0]
    balanced = [d for d in divisors if (n // d) % num_tc == 0]
    return max(balanced) if balanced else max(divisors)


# ---------------------------------------------------------------------------
# Wrapper
# ---------------------------------------------------------------------------

def basic_block_forward(x_nchw, w1_oihw, g1, b1, w2_oihw, g2, b2, num_groups,
                        *, batch_block=None, use_bf16_matmul=True, eps=1e-5,
                        vmem_budget_bytes=8 << 20):
    n, cin, h, w = x_nchw.shape
    cout = w1_oihw.shape[0]
    if cin != cout:
        # TODO(synk): stride>1 / downsample projection branch (unused here:
        # the reference block is built with downsample=None, stride=1).
        raise NotImplementedError("identity residual requires inplanes == planes")
    if cout % num_groups != 0:
        raise ValueError("planes must be divisible by num_groups")

    s = h * w
    s_pad = ((s + 127) // 128) * 128          # lane-dense spatial extent
    padded = s_pad != s
    compute_dtype = jnp.bfloat16 if use_bf16_matmul else jnp.float32
    compute_bytes = 2 if use_bf16_matmul else 4
    io_bytes = x_nchw.dtype.itemsize

    num_tc = _num_tensorcores_per_chip()
    if batch_block is None:
        nb = _pick_batch_block(n, cout, s_pad, io_bytes, compute_bytes, num_tc,
                               vmem_budget_bytes=vmem_budget_bytes)
    else:
        nb = int(batch_block)
    if nb < 1 or n % nb != 0:
        raise ValueError("batch_block must be a positive divisor of the batch size")
    lanes = nb * s_pad

    # (N, Cin, H, W) -> (Cin, N*S_pad): zero-pad lanes, one transpose, reshape.
    x = x_nchw.reshape(n, cin, s)
    if padded:
        x = jnp.pad(x, ((0, 0), (0, 0), (0, s_pad - s)))
    x_cs = jnp.transpose(x, (1, 0, 2)).reshape(cin, n * s_pad)

    # OIHW -> (Cout, 9*Cin); column order (kh, kw, cin) matches patch rows.
    w1_mat = jnp.transpose(w1_oihw, (0, 2, 3, 1)).reshape(cout, 9 * cin)
    w2_mat = jnp.transpose(w2_oihw, (0, 2, 3, 1)).reshape(cout, 9 * cout)
    g1_ = g1.reshape(cout, 1).astype(jnp.float32)
    b1_ = b1.reshape(cout, 1).astype(jnp.float32)
    g2_ = g2.reshape(cout, 1).astype(jnp.float32)
    b2_ = b2.reshape(cout, 1).astype(jnp.float32)
    gmat = _make_group_matrix(cout, num_groups, s)       # scaled by TRUE H*W

    tap = _make_tap_masks(h, w, s_pad)                                  # (9, s_pad)
    masks_np = np.tile(np.repeat(tap, cin, axis=0), (1, nb))            # (9C, lanes)
    masks = jnp.asarray(masks_np, dtype=compute_dtype)
    vmask = jnp.asarray(np.tile(tap[4:5], (1, nb)), dtype=jnp.float32)  # valid lanes

    kernel = functools.partial(
        basic_block_kernel, nb=nb, s_pad=s_pad, width=w, eps=eps,
        compute_dtype=compute_dtype, padded=padded)
    const = lambda i: (0, 0)
    out = pl.pallas_call(
        kernel,
        out_shape=jax.ShapeDtypeStruct((cout, n * s_pad), x_nchw.dtype),
        grid=(n // nb,),
        in_specs=[
            pl.BlockSpec((cin, lanes), lambda i: (0, i)),       # x
            pl.BlockSpec((9 * cin, lanes), const),              # tap masks
            pl.BlockSpec((1, lanes), const),                    # valid-lane mask
            pl.BlockSpec((cout, 9 * cin), const),               # w1
            pl.BlockSpec((cout, 1), const),                     # gamma1
            pl.BlockSpec((cout, 1), const),                     # beta1
            pl.BlockSpec((cout, 9 * cout), const),              # w2
            pl.BlockSpec((cout, 1), const),                     # gamma2
            pl.BlockSpec((cout, 1), const),                     # beta2
            pl.BlockSpec((cout, cout), const),                  # group matrix
        ],
        out_specs=pl.BlockSpec((cout, lanes), lambda i: (0, i)),
        scratch_shapes=[pltpu.VMEM((cout, lanes), jnp.float32)],
        compiler_params=pltpu.CompilerParams(
            dimension_semantics=("parallel",),
            vmem_limit_bytes=32 * 1024 * 1024),
    )(x_cs, masks, vmask, w1_mat, g1_, b1_, w2_mat, g2_, b2_, gmat)

    out = out.reshape(cout, n, s_pad)[:, :, :s]                 # drop pad lanes
    return jnp.transpose(out, (1, 0, 2)).reshape(n, cout, h, w)


# ---------------------------------------------------------------------------
# Pure-JAX NCHW reference matching the PyTorch forward.
# ---------------------------------------------------------------------------

def _reference_forward(x, w1, g1, b1, w2, g2, b2, num_groups, eps=1e-5):
    def conv(x, w):
        return lax.conv_general_dilated(
            x, w, window_strides=(1, 1), padding=((1, 1), (1, 1)),
            dimension_numbers=("NCHW", "OIHW", "NCHW"))

    def gn(x, g, b):
        nn_, cc, hh, ww = x.shape
        xg = x.reshape(nn_, num_groups, cc // num_groups, hh, ww)
        m = xg.mean(axis=(2, 3, 4), keepdims=True)
        v = ((xg - m) ** 2).mean(axis=(2, 3, 4), keepdims=True)
        xn = ((xg - m) / jnp.sqrt(v + eps)).reshape(nn_, cc, hh, ww)
        return xn * g.reshape(1, cc, 1, 1) + b.reshape(1, cc, 1, 1)

    out = jax.nn.relu(gn(conv(x, w1), g1, b1))
    out = gn(conv(out, w2), g2, b2) + x
    return jax.nn.relu(out)


def _check(name, out, ref, atol, rtol):
    if not jnp.allclose(out, ref, atol=atol, rtol=rtol):
        err = float(jnp.max(jnp.abs(out - ref)))
        raise AssertionError(f"{name}: Pallas BasicBlock mismatch, max err={err}")


if __name__ == "__main__":
    key = jax.random.PRNGKey(0)

    def make_params(k, inplanes, planes):
        ks = jax.random.split(k, 6)
        w1 = 0.1 * jax.random.normal(ks[0], (planes, inplanes, 3, 3), jnp.float32)
        w2 = 0.1 * jax.random.normal(ks[1], (planes, planes, 3, 3), jnp.float32)
        g1 = 1.0 + 0.1 * jax.random.normal(ks[2], (planes,), jnp.float32)
        b1 = 0.1 * jax.random.normal(ks[3], (planes,), jnp.float32)
        g2 = 1.0 + 0.1 * jax.random.normal(ks[4], (planes,), jnp.float32)
        b2 = 0.1 * jax.random.normal(ks[5], (planes,), jnp.float32)
        return w1, w2, g1, b1, g2, b2

    kp1, kp2, kx1, kx2 = jax.random.split(key, 4)

    # Case 1: lane-aligned spatial (16x16 = 256 lanes), auto batch block.
    N, planes, H, W = 2, 8, 16, 16
    groups = min(32, planes // 4)                       # = 2
    x = jax.random.normal(kx1, (N, planes, H, W), jnp.float32)
    w1, w2, g1, b1, g2, b2 = make_params(kp1, planes, planes)
    ref = jax.block_until_ready(_reference_forward(x, w1, g1, b1, w2, g2, b2, groups))

    out_f32 = jax.block_until_ready(basic_block_forward(
        x, w1, g1, b1, w2, g2, b2, groups, use_bf16_matmul=False))
    _check("aligned/f32", out_f32, ref, atol=1e-4, rtol=1e-4)

    out_bf16 = jax.block_until_ready(basic_block_forward(
        x, w1, g1, b1, w2, g2, b2, groups))             # bf16 matmuls (default)
    _check("aligned/bf16", out_bf16, ref, atol=5e-2, rtol=5e-2)

    # Case 2: non-128-multiple spatial (10x10 -> padded to 128 lanes),
    # explicit lane-packing of 2 images per grid step.
    N2, H2, W2 = 4, 10, 10
    x2 = jax.random.normal(kx2, (N2, planes, H2, W2), jnp.float32)
    w1b, w2b, g1b, b1b, g2b, b2b = make_params(kp2, planes, planes)
    ref2 = jax.block_until_ready(_reference_forward(x2, w1b, g1b, b1b, w2b, g2b, b2b, groups))

    out2 = jax.block_until_ready(basic_block_forward(
        x2, w1b, g1b, b1b, w2b, g2b, b2b, groups,
        batch_block=2, use_bf16_matmul=False))
    _check("padded/f32", out2, ref2, atol=1e-4, rtol=1e-4)

    print("KERNEL_OK")
</pallas_src>

<mosaic_0001>
module attributes {stable_mosaic.version = 11 : i64} {
  func.func @basic_block_kernel(%arg0: i32, %arg1: memref<8x256xf32, #tpu.memory_space<vmem>>, %arg2: memref<72x256xf32, #tpu.memory_space<vmem>>, %arg3: memref<1x256xf32, #tpu.memory_space<vmem>>, %arg4: memref<8x72xf32, #tpu.memory_space<vmem>>, %arg5: memref<8x1xf32, #tpu.memory_space<vmem>>, %arg6: memref<8x1xf32, #tpu.memory_space<vmem>>, %arg7: memref<8x72xf32, #tpu.memory_space<vmem>>, %arg8: memref<8x1xf32, #tpu.memory_space<vmem>>, %arg9: memref<8x1xf32, #tpu.memory_space<vmem>>, %arg10: memref<8x8xf32, #tpu.memory_space<vmem>>, %arg11: memref<8x256xf32, #tpu.memory_space<vmem>>, %arg12: memref<8x256xf32, #tpu.memory_space<vmem>>) attributes {dimension_semantics = [#tpu.dimension_semantics<parallel>], iteration_bounds = array<i64: 2>, scalar_prefetch = 0 : i64, scratch_operands = 1 : i64, tpu.core_type = #tpu.core_type<tc>, window_params = [{transform_indices = @transform_0, window_bounds = array<i64: 8, 256>}, {pipeline_mode = #tpu.pipeline_mode<synchronous>, transform_indices = @transform_1, window_bounds = array<i64: 72, 256>}, {pipeline_mode = #tpu.pipeline_mode<synchronous>, transform_indices = @transform_2, window_bounds = array<i64: 1, 256>}, {pipeline_mode = #tpu.pipeline_mode<synchronous>, transform_indices = @transform_3, window_bounds = array<i64: 8, 72>}, {pipeline_mode = #tpu.pipeline_mode<synchronous>, transform_indices = @transform_4, window_bounds = array<i64: 8, 1>}, {pipeline_mode = #tpu.pipeline_mode<synchronous>, transform_indices = @transform_5, window_bounds = array<i64: 8, 1>}, {pipeline_mode = #tpu.pipeline_mode<synchronous>, transform_indices = @transform_6, window_bounds = array<i64: 8, 72>}, {pipeline_mode = #tpu.pipeline_mode<synchronous>, transform_indices = @transform_7, window_bounds = array<i64: 8, 1>}, {pipeline_mode = #tpu.pipeline_mode<synchronous>, transform_indices = @transform_8, window_bounds = array<i64: 8, 1>}, {pipeline_mode = #tpu.pipeline_mode<synchronous>, transform_indices = @transform_9, window_bounds = array<i64: 8, 8>}, {transform_indices = @transform_10, window_bounds = array<i64: 8, 256>}]} {
    %c0 = arith.constant 0 : index
    %c0_0 = arith.constant 0 : index
    %0 = vector.load %arg2[%c0, %c0_0] : memref<72x256xf32, #tpu.memory_space<vmem>>, vector<72x256xf32>
    %c0_1 = arith.constant 0 : index
    %c0_2 = arith.constant 0 : index
    %1 = vector.load %arg10[%c0_1, %c0_2] : memref<8x8xf32, #tpu.memory_space<vmem>>, vector<8x8xf32>
    %c0_3 = arith.constant 0 : index
    %c0_4 = arith.constant 0 : index
    %2 = vector.load %arg5[%c0_3, %c0_4] : memref<8x1xf32, #tpu.memory_space<vmem>>, vector<8x1xf32>
    %c0_5 = arith.constant 0 : index
    %c0_6 = arith.constant 0 : index
    %3 = vector.load %arg6[%c0_5, %c0_6] : memref<8x1xf32, #tpu.memory_space<vmem>>, vector<8x1xf32>
    %c0_7 = arith.constant 0 : index
    %c0_8 = arith.constant 0 : index
    %4 = vector.load %arg8[%c0_7, %c0_8] : memref<8x1xf32, #tpu.memory_space<vmem>>, vector<8x1xf32>
    %c0_9 = arith.constant 0 : index
    %c0_10 = arith.constant 0 : index
    %5 = vector.load %arg9[%c0_9, %c0_10] : memref<8x1xf32, #tpu.memory_space<vmem>>, vector<8x1xf32>
    %c0_11 = arith.constant 0 : index
    %c0_12 = arith.constant 0 : index
    %6 = vector.load %arg1[%c0_11, %c0_12] : memref<8x256xf32, #tpu.memory_space<vmem>>, vector<8x256xf32>
    %c17_i32 = arith.constant 17 : i32
    %7 = tpu.dynamic_rotate %6 by %c17_i32 dim 1 : vector<8x256xf32>, i32 -> vector<8x256xf32>
    %c16_i32 = arith.constant 16 : i32
    %8 = tpu.dynamic_rotate %6 by %c16_i32 dim 1 : vector<8x256xf32>, i32 -> vector<8x256xf32>
    %c15_i32 = arith.constant 15 : i32
    %9 = tpu.dynamic_rotate %6 by %c15_i32 dim 1 : vector<8x256xf32>, i32 -> vector<8x256xf32>
    %c1_i32 = arith.constant 1 : i32
    %10 = tpu.dynamic_rotate %6 by %c1_i32 dim 1 : vector<8x256xf32>, i32 -> vector<8x256xf32>
    %c255_i32 = arith.constant 255 : i32
    %11 = tpu.dynamic_rotate %6 by %c255_i32 dim 1 : vector<8x256xf32>, i32 -> vector<8x256xf32>
    %c241_i32 = arith.constant 241 : i32
    %12 = tpu.dynamic_rotate %6 by %c241_i32 dim 1 : vector<8x256xf32>, i32 -> vector<8x256xf32>
    %c240_i32 = arith.constant 240 : i32
    %13 = tpu.dynamic_rotate %6 by %c240_i32 dim 1 : vector<8x256xf32>, i32 -> vector<8x256xf32>
    %c239_i32 = arith.constant 239 : i32
    %14 = tpu.dynamic_rotate %6 by %c239_i32 dim 1 : vector<8x256xf32>, i32 -> vector<8x256xf32>
    %15 = tpu.concatenate %7, %8, %9, %10, %6, %11, %12, %13, %14 in 0 : vector<8x256xf32>, vector<8x256xf32>, vector<8x256xf32>, vector<8x256xf32>, vector<8x256xf32>, vector<8x256xf32>, vector<8x256xf32>, vector<8x256xf32>, vector<8x256xf32> -> vector<72x256xf32>
    %16 = arith.mulf %15, %0 : vector<72x256xf32>
    %c0_13 = arith.constant 0 : index
    %c0_14 = arith.constant 0 : index
    %17 = vector.load %arg4[%c0_13, %c0_14] : memref<8x72xf32, #tpu.memory_space<vmem>>, vector<8x72xf32>
    %cst = arith.constant dense<0.000000e+00> : vector<8x256xf32>
    %18 = tpu.matmul %17, %16, %cst {dimension_numbers = #tpu.dot_dimension_numbers<[1], [0], [0], [1], [0, 0, 1, 1], [], []>} : vector<8x72xf32>, vector<72x256xf32>, vector<8x256xf32> -> vector<8x256xf32>
    %cst_15 = arith.constant dense<0.000000e+00> : vector<8xf32>
    %19 = vector.multi_reduction <add>, %18, %cst_15 [1] : vector<8x256xf32> to vector<8xf32>
    %20 = vector.shape_cast %19 : vector<8xf32> to vector<8x1xf32>
    %21 = vector.shape_cast %20 : vector<8x1xf32> to vector<8x1xf32>
    %22 = vector.broadcast %21 : vector<8x1xf32> to vector<8x128xf32>
    %cst_16 = arith.constant dense<0.000000e+00> : vector<8x128xf32>
    %23 = tpu.matmul %1, %22, %cst_16 {dimension_numbers = #tpu.dot_dimension_numbers<[1], [0], [0], [1], [0, 0, 1, 1], [], []>} : vector<8x8xf32>, vector<8x128xf32>, vector<8x128xf32> -> vector<8x128xf32>
    %24 = vector.extract_strided_slice %23 {offsets = [0, 0], sizes = [8, 1], strides = [1, 1]} : vector<8x128xf32> to vector<8x1xf32>
    %25 = vector.broadcast %24 : vector<8x1xf32> to vector<8x256xf32>
    %26 = arith.subf %18, %25 : vector<8x256xf32>
    %27 = arith.mulf %26, %26 : vector<8x256xf32>
    %cst_17 = arith.constant dense<0.000000e+00> : vector<8xf32>
    %28 = vector.multi_reduction <add>, %27, %cst_17 [1] : vector<8x256xf32> to vector<8xf32>
    %29 = vector.shape_cast %28 : vector<8xf32> to vector<8x1xf32>
    %30 = vector.shape_cast %29 : vector<8x1xf32> to vector<8x1xf32>
    %31 = vector.broadcast %30 : vector<8x1xf32> to vector<8x128xf32>
    %cst_18 = arith.constant dense<0.000000e+00> : vector<8x128xf32>
    %32 = tpu.matmul %1, %31, %cst_18 {dimension_numbers = #tpu.dot_dimension_numbers<[1], [0], [0], [1], [0, 0, 1, 1], [], []>} : vector<8x8xf32>, vector<8x128xf32>, vector<8x128xf32> -> vector<8x128xf32>
    %33 = vector.extract_strided_slice %32 {offsets = [0, 0], sizes = [8, 1], strides = [1, 1]} : vector<8x128xf32> to vector<8x1xf32>
    %cst_19 = arith.constant 9.99999974E-6 : f32
    %34 = vector.broadcast %cst_19 : f32 to vector<8x1xf32>
    %35 = arith.addf %33, %34 : vector<8x1xf32>
    %36 = math.rsqrt %35 : vector<8x1xf32>
    %37 = arith.mulf %36, %2 : vector<8x1xf32>
    %38 = vector.broadcast %37 : vector<8x1xf32> to vector<8x256xf32>
    %39 = arith.mulf %26, %38 : vector<8x256xf32>
    %40 = vector.broadcast %3 : vector<8x1xf32> to vector<8x256xf32>
    %41 = arith.addf %39, %40 : vector<8x256xf32>
    %cst_20 = arith.constant 0.000000e+00 : f32
    %42 = vector.broadcast %cst_20 : f32 to vector<8x256xf32>
    %43 = arith.maximumf %41, %42 : vector<8x256xf32>
    %c0_21 = arith.constant 0 : index
    %c0_22 = arith.constant 0 : index
    %44 = vector.load %arg12[%c0_21, %c0_22] : memref<8x256xf32, #tpu.memory_space<vmem>>, vector<8x256xf32>
    tpu.vector_store %arg12[%c0_21, %c0_22], %43 {strides = array<i32>} : memref<8x256xf32, #tpu.memory_space<vmem>>, vector<8x256xf32>,
    %c0_23 = arith.constant 0 : index
    %c0_24 = arith.constant 0 : index
    %45 = vector.load %arg12[%c0_23, %c0_24] : memref<8x256xf32, #tpu.memory_space<vmem>>, vector<8x256xf32>
    %c17_i32_25 = arith.constant 17 : i32
    %46 = tpu.dynamic_rotate %45 by %c17_i32_25 dim 1 : vector<8x256xf32>, i32 -> vector<8x256xf32>
    %c16_i32_26 = arith.constant 16 : i32
    %47 = tpu.dynamic_rotate %45 by %c16_i32_26 dim 1 : vector<8x256xf32>, i32 -> vector<8x256xf32>
    %c15_i32_27 = arith.constant 15 : i32
    %48 = tpu.dynamic_rotate %45 by %c15_i32_27 dim 1 : vector<8x256xf32>, i32 -> vector<8x256xf32>
    %c1_i32_28 = arith.constant 1 : i32
    %49 = tpu.dynamic_rotate %45 by %c1_i32_28 dim 1 : vector<8x256xf32>, i32 -> vector<8x256xf32>
    %c255_i32_29 = arith.constant 255 : i32
    %50 = tpu.dynamic_rotate %45 by %c255_i32_29 dim 1 : vector<8x256xf32>, i32 -> vector<8x256xf32>
    %c241_i32_30 = arith.constant 241 : i32
    %51 = tpu.dynamic_rotate %45 by %c241_i32_30 dim 1 : vector<8x256xf32>, i32 -> vector<8x256xf32>
    %c240_i32_31 = arith.constant 240 : i32
    %52 = tpu.dynamic_rotate %45 by %c240_i32_31 dim 1 : vector<8x256xf32>, i32 -> vector<8x256xf32>
    %c239_i32_32 = arith.constant 239 : i32
    %53 = tpu.dynamic_rotate %45 by %c239_i32_32 dim 1 : vector<8x256xf32>, i32 -> vector<8x256xf32>
    %54 = tpu.concatenate %46, %47, %48, %49, %45, %50, %51, %52, %53 in 0 : vector<8x256xf32>, vector<8x256xf32>, vector<8x256xf32>, vector<8x256xf32>, vector<8x256xf32>, vector<8x256xf32>, vector<8x256xf32>, vector<8x256xf32>, vector<8x256xf32> -> vector<72x256xf32>
    %55 = arith.mulf %54, %0 : vector<72x256xf32>
    %c0_33 = arith.constant 0 : index
    %c0_34 = arith.constant 0 : index
    %56 = vector.load %arg7[%c0_33, %c0_34] : memref<8x72xf32, #tpu.memory_space<vmem>>, vector<8x72xf32>
    %cst_35 = arith.constant dense<0.000000e+00> : vector<8x256xf32>
    %57 = tpu.matmul %56, %55, %cst_35 {dimension_numbers = #tpu.dot_dimension_numbers<[1], [0], [0], [1], [0, 0, 1, 1], [], []>} : vector<8x72xf32>, vector<72x256xf32>, vector<8x256xf32> -> vector<8x256xf32>
    %cst_36 = arith.constant dense<0.000000e+00> : vector<8xf32>
    %58 = vector.multi_reduction <add>, %57, %cst_36 [1] : vector<8x256xf32> to vector<8xf32>
    %59 = vector.shape_cast %58 : vector<8xf32> to vector<8x1xf32>
    %60 = vector.shape_cast %59 : vector<8x1xf32> to vector<8x1xf32>
    %61 = vector.broadcast %60 : vector<8x1xf32> to vector<8x128xf32>
    %cst_37 = arith.constant dense<0.000000e+00> : vector<8x128xf32>
    %62 = tpu.matmul %1, %61, %cst_37 {dimension_numbers = #tpu.dot_dimension_numbers<[1], [0], [0], [1], [0, 0, 1, 1], [], []>} : vector<8x8xf32>, vector<8x128xf32>, vector<8x128xf32> -> vector<8x128xf32>
    %63 = vector.extract_strided_slice %62 {offsets = [0, 0], sizes = [8, 1], strides = [1, 1]} : vector<8x128xf32> to vector<8x1xf32>
    %64 = vector.broadcast %63 : vector<8x1xf32> to vector<8x256xf32>
    %65 = arith.subf %57, %64 : vector<8x256xf32>
    %66 = arith.mulf %65, %65 : vector<8x256xf32>
    %cst_38 = arith.constant dense<0.000000e+00> : vector<8xf32>
    %67 = vector.multi_reduction <add>, %66, %cst_38 [1] : vector<8x256xf32> to vector<8xf32>
    %68 = vector.shape_cast %67 : vector<8xf32> to vector<8x1xf32>
    %69 = vector.shape_cast %68 : vector<8x1xf32> to vector<8x1xf32>
    %70 = vector.broadcast %69 : vector<8x1xf32> to vector<8x128xf32>
    %cst_39 = arith.constant dense<0.000000e+00> : vector<8x128xf32>
    %71 = tpu.matmul %1, %70, %cst_39 {dimension_numbers = #tpu.dot_dimension_numbers<[1], [0], [0], [1], [0, 0, 1, 1], [], []>} : vector<8x8xf32>, vector<8x128xf32>, vector<8x128xf32> -> vector<8x128xf32>
    %72 = vector.extract_strided_slice %71 {offsets = [0, 0], sizes = [8, 1], strides = [1, 1]} : vector<8x128xf32> to vector<8x1xf32>
    %cst_40 = arith.constant 9.99999974E-6 : f32
    %73 = vector.broadcast %cst_40 : f32 to vector<8x1xf32>
    %74 = arith.addf %72, %73 : vector<8x1xf32>
    %75 = math.rsqrt %74 : vector<8x1xf32>
    %76 = arith.mulf %75, %4 : vector<8x1xf32>
    %77 = vector.broadcast %76 : vector<8x1xf32> to vector<8x256xf32>
    %78 = arith.mulf %65, %77 : vector<8x256xf32>
    %79 = vector.broadcast %5 : vector<8x1xf32> to vector<8x256xf32>
    %80 = arith.addf %78, %79 : vector<8x256xf32>
    %c0_41 = arith.constant 0 : index
    %c0_42 = arith.constant 0 : index
    %81 = vector.load %arg1[%c0_41, %c0_42] : memref<8x256xf32, #tpu.memory_space<vmem>>, vector<8x256xf32>
    %82 = arith.addf %80, %81 : vector<8x256xf32>
    %cst_43 = arith.constant 0.000000e+00 : f32
    %83 = vector.broadcast %cst_43 : f32 to vector<8x256xf32>
    %84 = arith.maximumf %82, %83 : vector<8x256xf32>
    %c0_44 = arith.constant 0 : index
    %c0_45 = arith.constant 0 : index
    %85 = vector.load %arg11[%c0_44, %c0_45] : memref<8x256xf32, #tpu.memory_space<vmem>>, vector<8x256xf32>
    tpu.vector_store %arg11[%c0_44, %c0_45], %84 {strides = array<i32>} : memref<8x256xf32, #tpu.memory_space<vmem>>, vector<8x256xf32>,
    return
  }
  func.func @transform_0(%arg0: i32) -> (i32, i32) {
    %c0_i32 = arith.constant 0 : i32
    %c0_i32_0 = arith.constant 0 : i32
    return %c0_i32, %arg0 : i32, i32
  }
  func.func @transform_1(%arg0: i32) -> (i32, i32) {
    %c0_i32 = arith.constant 0 : i32
    %c0_i32_0 = arith.constant 0 : i32
    %c0_i32_1 = arith.constant 0 : i32
    return %c0_i32, %c0_i32_0 : i32, i32
  }
  func.func @transform_2(%arg0: i32) -> (i32, i32) {
    %c0_i32 = arith.constant 0 : i32
    %c0_i32_0 = arith.constant 0 : i32
    %c0_i32_1 = arith.constant 0 : i32
    return %c0_i32, %c0_i32_0 : i32, i32
  }
  func.func @transform_3(%arg0: i32) -> (i32, i32) {
    %c0_i32 = arith.constant 0 : i32
    %c0_i32_0 = arith.constant 0 : i32
    %c0_i32_1 = arith.constant 0 : i32
    return %c0_i32, %c0_i32_0 : i32, i32
  }
  func.func @transform_4(%arg0: i32) -> (i32, i32) {
    %c0_i32 = arith.constant 0 : i32
    %c0_i32_0 = arith.constant 0 : i32
    %c0_i32_1 = arith.constant 0 : i32
    return %c0_i32, %c0_i32_0 : i32, i32
  }
  func.func @transform_5(%arg0: i32) -> (i32, i32) {
    %c0_i32 = arith.constant 0 : i32
    %c0_i32_0 = arith.constant 0 : i32
    %c0_i32_1 = arith.constant 0 : i32
    return %c0_i32, %c0_i32_0 : i32, i32
  }
  func.func @transform_6(%arg0: i32) -> (i32, i32) {
    %c0_i32 = arith.constant 0 : i32
    %c0_i32_0 = arith.constant 0 : i32
    %c0_i32_1 = arith.constant 0 : i32
    return %c0_i32, %c0_i32_0 : i32, i32
  }
  func.func @transform_7(%arg0: i32) -> (i32, i32) {
    %c0_i32 = arith.constant 0 : i32
    %c0_i32_0 = arith.constant 0 : i32
    %c0_i32_1 = arith.constant 0 : i32
    return %c0_i32, %c0_i32_0 : i32, i32
  }
  func.func @transform_8(%arg0: i32) -> (i32, i32) {
    %c0_i32 = arith.constant 0 : i32
    %c0_i32_0 = arith.constant 0 : i32
    %c0_i32_1 = arith.constant 0 : i32
    return %c0_i32, %c0_i32_0 : i32, i32
  }
  func.func @transform_9(%arg0: i32) -> (i32, i32) {
    %c0_i32 = arith.constant 0 : i32
    %c0_i32_0 = arith.constant 0 : i32
    %c0_i32_1 = arith.constant 0 : i32
    return %c0_i32, %c0_i32_0 : i32, i32
  }
  func.func @transform_10(%arg0: i32) -> (i32, i32) {
    %c0_i32 = arith.constant 0 : i32
    %c0_i32_0 = arith.constant 0 : i32
    return %c0_i32, %arg0 : i32, i32
  }
}

</mosaic_0001>

<llo_original>
// kernel: tpu_custom_call.1
$region0: #{tpu_custom_call.1}
  #allocation0 [shape = 'u32[]', space=smem, size = 0x4, offset = 0x4, fixed_abs, tag = 'smem constant byte address 0x4 - core index']
  #allocation1 [shape = 'u32[144,128]{1,0:T(1,128)}', space=vmem, size = 0x12000, scoped, tag = 'internal scratch']
  #allocation2 [shape = 'f32[8,256]{1,0:T(8,128)}', space=vmem, size = 0x2000, scoped, tag = 'scratch operand']
  %s0 = inlined_call_operand.vmem [shape: f32[8,512], index: 0, kind: input, shape index: {}]
  %s1 = inlined_call_operand.hbm [shape: f32[72,256], index: 1, kind: input, shape index: {}]
  %s2 = inlined_call_operand.vmem [shape: f32[1,256], index: 2, kind: input, shape index: {}]
  %s3 = inlined_call_operand.vmem [shape: f32[8,72], index: 3, kind: input, shape index: {}]
  %s4 = inlined_call_operand.vmem [shape: f32[8,1], index: 4, kind: input, shape index: {}]
  %s5 = inlined_call_operand.vmem [shape: f32[8,1], index: 5, kind: input, shape index: {}]
  %s6 = inlined_call_operand.vmem [shape: f32[8,72], index: 6, kind: input, shape index: {}]
  %s7 = inlined_call_operand.vmem [shape: f32[8,1], index: 7, kind: input, shape index: {}]
  %s8 = inlined_call_operand.vmem [shape: f32[8,1], index: 8, kind: input, shape index: {}]
  %s9 = inlined_call_operand.vmem [shape: f32[8,8], index: 9, kind: input, shape index: {}]
  %s10 = inlined_call_operand.hbm [shape: f32[8,512], index: 10, kind: output, shape index: {}]
  %s11 = sld [smem:[#allocation0]]
  $region77: #{tpu_custom_call.1} parent=0
    _
  %s13 = ssub.s32 1, %s11
  %s14 = scalar_select 0, %s13, %s11
  $region1: #{tpu_custom_call.1} parent=0
    #allocation3 [shape = 'u8[73728]{0}', space=vmem, size = 0x12000, scoped, tag = 'input window, operand 1, single buffered']
    #allocation4 [shape = 's32[2]{0}', space=sflag, size = 0x8, scoped, tag = 'scoped memory for tpu_custom_call.1']
    #allocation5 [shape = 's32[2]{0}', space=sflag, size = 0x8, scoped, tag = 'scoped memory for tpu_custom_call.1']
    #allocation6 [shape = 'u8[16384]{0}', space=vmem, size = 0x4000, scoped, tag = 'output window, operand 0']
    %15 = vsyncpa [#allocation4], 0
    %16 = vsyncpa [#allocation5], 0
    %s17 = scalar_lea.sflag [#allocation5], 1
    %18 = vsyncpa %s17, 0
    loop: start=0, step=1, limit=4
    $region2: #{tpu_custom_call.1} parent=1 // loop_pre_header
      _
    $region3: #{tpu_custom_call.1} parent=1 // loop_header
      %s20 = sphi 0, %s24
      %p21 = scmp.ge.s32.totalorder %s20, 4
      %s30 = sphi 0, %s32
      %s33 = sphi 0, %s30
      %s34 = sphi 0, %s33
      %s50 = sphi 0, %s34
      %s54 = sphi 0, %s54
      %s56 = sphi 0, %s54
      %s57 = sphi 0, %s56
      %s71 = sphi 0, %s57
      %s75 = sphi 0, %s75
      %s77 = sphi 0, %s75
      %s78 = sphi 0, %s77
      %s92 = sphi 0, %s78
      %s96 = sphi 0, %s96
      %s98 = sphi 0, %s96
      %s99 = sphi 0, %s98
      %s113 = sphi 0, %s99
      %s117 = sphi 0, %s117
      %s119 = sphi 0, %s117
      %s120 = sphi 0, %s119
      %s134 = sphi 0, %s120
      %s138 = sphi 0, %s138
      %s140 = sphi 0, %s138
      %s141 = sphi 0, %s140
      %s155 = sphi 0, %s141
      %s159 = sphi 0, %s159
      %s161 = sphi 0, %s159
      %s162 = sphi 0, %s161
      %s176 = sphi 0, %s162
      %s180 = sphi 0, %s180
      %s182 = sphi 0, %s180
      %s183 = sphi 0, %s182
      %s197 = sphi 0, %s183
      %s201 = sphi 0, %s201
      %s203 = sphi 0, %s201
      %s204 = sphi 0, %s203
      %s218 = sphi 0, %s204
      %s222 = sphi 0, %s222
      %s224 = sphi 0, %s222
      %s225 = sphi 0, %s224
      %s239 = sphi 0, %s225
      %s245 = sphi 0, %s247
      %s248 = sphi 0, %s245
      %s249 = sphi 0, %s248
      %s265 = sphi 0, %s249
    $region4: #{tpu_custom_call.1} parent=1 // loop_header_branch
      %23 = sbr.rel (%p21) target = $region8
    $region5: #{tpu_custom_call.1} parent=1 // loop_body
      %s25 = ssub.s32 %s20, 1
      %s26 = ssub.s32 %s20, 2
      %s27 = sadd.s32 %s20, 1
      %s28 = ssub.s32 %s20, %s27
      %p29 = scmp.eq.s32.totalorder %s28, 0
      %s31 = sadd.s32 %s30, 1
      %s32 = scalar_select %p29, %s30, %s31
      %p35 = pneg %p29
      %p36 = scmp.eq.s32.totalorder %s20, 1
      %p37 = por %p35, %p36
      %p38 = scmp.ne.s32.totalorder %s30, %s33
      %p39 = scmp.eq.s32.totalorder %s20, 0
      %p40 = por %p38, %p39
      %p41 = scmp.ne.s32.totalorder %s30, %s33
      %p42 = scmp.eq.s32.totalorder %s25, 1
      %p43 = por %p41, %p42
      %p44 = scmp.ne.s32.totalorder %s33, %s34
      %p45 = scmp.eq.s32.totalorder %s25, 0
      %p46 = por %p44, %p45
      %p47 = scmp.ne.s32.totalorder %s33, %s34
      %p48 = scmp.eq.s32.totalorder %s26, 1
      %p49 = por %p47, %p48
      %p51 = scmp.ne.s32.totalorder %s34, %s50
      %p52 = scmp.eq.s32.totalorder %s26, 0
      %p53 = por %p51, %p52
      %s55 = sadd.s32 %s54, 1
      %p58 = scmp.eq.s32.totalorder %s20, 1
      %p59 = scmp.ne.s32.totalorder %s54, %s56
      %p60 = scmp.eq.s32.totalorder %s20, 0
      %p61 = por %p59, %p60
      %p62 = scmp.ne.s32.totalorder %s54, %s56
      %p63 = scmp.eq.s32.totalorder %s25, 1
      %p64 = por %p62, %p63
      %p65 = scmp.ne.s32.totalorder %s56, %s57
      %p66 = scmp.eq.s32.totalorder %s25, 0
      %p67 = por %p65, %p66
      %p68 = scmp.ne.s32.totalorder %s56, %s57
      %p69 = scmp.eq.s32.totalorder %s26, 1
      %p70 = por %p68, %p69
      %p72 = scmp.ne.s32.totalorder %s57, %s71
      %p73 = scmp.eq.s32.totalorder %s26, 0
      %p74 = por %p72, %p73
      %s76 = sadd.s32 %s75, 1
      %p79 = scmp.eq.s32.totalorder %s20, 1
      %p80 = scmp.ne.s32.totalorder %s75, %s77
      %p81 = scmp.eq.s32.totalorder %s20, 0
      %p82 = por %p80, %p81
      %p83 = scmp.ne.s32.totalorder %s75, %s77
      %p84 = scmp.eq.s32.totalorder %s25, 1
      %p85 = por %p83, %p84
      %p86 = scmp.ne.s32.totalorder %s77, %s78
      %p87 = scmp.eq.s32.totalorder %s25, 0
      %p88 = por %p86, %p87
      %p89 = scmp.ne.s32.totalorder %s77, %s78
      %p90 = scmp.eq.s32.totalorder %s26, 1
      %p91 = por %p89, %p90
      %p93 = scmp.ne.s32.totalorder %s78, %s92
      %p94 = scmp.eq.s32.totalorder %s26, 0
      %p95 = por %p93, %p94
      %s97 = sadd.s32 %s96, 1
      %p100 = scmp.eq.s32.totalorder %s20, 1
      %p101 = scmp.ne.s32.totalorder %s96, %s98
      %p102 = scmp.eq.s32.totalorder %s20, 0
      %p103 = por %p101, %p102
      %p104 = scmp.ne.s32.totalorder %s96, %s98
      %p105 = scmp.eq.s32.totalorder %s25, 1
      %p106 = por %p104, %p105
      %p107 = scmp.ne.s32.totalorder %s98, %s99
      %p108 = scmp.eq.s32.totalorder %s25, 0
      %p109 = por %p107, %p108
      %p110 = scmp.ne.s32.totalorder %s98, %s99
      %p111 = scmp.eq.s32.totalorder %s26, 1
      %p112 = por %p110, %p111
      %p114 = scmp.ne.s32.totalorder %s99, %s113
      %p115 = scmp.eq.s32.totalorder %s26, 0
      %p116 = por %p114, %p115
      %s118 = sadd.s32 %s117, 1
      %p121 = scmp.eq.s32.totalorder %s20, 1
      %p122 = scmp.ne.s32.totalorder %s117, %s119
      %p123 = scmp.eq.s32.totalorder %s20, 0
      %p124 = por %p122, %p123
      %p125 = scmp.ne.s32.totalorder %s117, %s119
      %p126 = scmp.eq.s32.totalorder %s25, 1
      %p127 = por %p125, %p126
      %p128 = scmp.ne.s32.totalorder %s119, %s120
      %p129 = scmp.eq.s32.totalorder %s25, 0
      %p130 = por %p128, %p129
      %p131 = scmp.ne.s32.totalorder %s119, %s120
      %p132 = scmp.eq.s32.totalorder %s26, 1
      %p133 = por %p131, %p132
      %p135 = scmp.ne.s32.totalorder %s120, %s134
      %p136 = scmp.eq.s32.totalorder %s26, 0
      %p137 = por %p135, %p136
      %s139 = sadd.s32 %s138, 1
      %p142 = scmp.eq.s32.totalorder %s20, 1
      %p143 = scmp.ne.s32.totalorder %s138, %s140
      %p144 = scmp.eq.s32.totalorder %s20, 0
      %p145 = por %p143, %p144
      %p146 = scmp.ne.s32.totalorder %s138, %s140
      %p147 = scmp.eq.s32.totalorder %s25, 1
      %p148 = por %p146, %p147
      %p149 = scmp.ne.s32.totalorder %s140, %s141
      %p150 = scmp.eq.s32.totalorder %s25, 0
      %p151 = por %p149, %p150
      %p152 = scmp.ne.s32.totalorder %s140, %s141
      %p153 = scmp.eq.s32.totalorder %s26, 1
      %p154 = por %p152, %p153
      %p156 = scmp.ne.s32.totalorder %s141, %s155
      %p157 = scmp.eq.s32.totalorder %s26, 0
      %p158 = por %p156, %p157
      %s160 = sadd.s32 %s159, 1
      %p163 = scmp.eq.s32.totalorder %s20, 1
      %p164 = scmp.ne.s32.totalorder %s159, %s161
      %p165 = scmp.eq.s32.totalorder %s20, 0
      %p166 = por %p164, %p165
      %p167 = scmp.ne.s32.totalorder %s159, %s161
      %p168 = scmp.eq.s32.totalorder %s25, 1
      %p169 = por %p167, %p168
      %p170 = scmp.ne.s32.totalorder %s161, %s162
      %p171 = scmp.eq.s32.totalorder %s25, 0
      %p172 = por %p170, %p171
      %p173 = scmp.ne.s32.totalorder %s161, %s162
      %p174 = scmp.eq.s32.totalorder %s26, 1
      %p175 = por %p173, %p174
      %p177 = scmp.ne.s32.totalorder %s162, %s176
      %p178 = scmp.eq.s32.totalorder %s26, 0
      %p179 = por %p177, %p178
      %s181 = sadd.s32 %s180, 1
      %p184 = scmp.eq.s32.totalorder %s20, 1
      %p185 = scmp.ne.s32.totalorder %s180, %s182
      %p186 = scmp.eq.s32.totalorder %s20, 0
      %p187 = por %p185, %p186
      %p188 = scmp.ne.s32.totalorder %s180, %s182
      %p189 = scmp.eq.s32.totalorder %s25, 1
      %p190 = por %p188, %p189
      %p191 = scmp.ne.s32.totalorder %s182, %s183
      %p192 = scmp.eq.s32.totalorder %s25, 0
      %p193 = por %p191, %p192
      %p194 = scmp.ne.s32.totalorder %s182, %s183
      %p195 = scmp.eq.s32.totalorder %s26, 1
      %p196 = por %p194, %p195
      %p198 = scmp.ne.s32.totalorder %s183, %s197
      %p199 = scmp.eq.s32.totalorder %s26, 0
      %p200 = por %p198, %p199
      %s202 = sadd.s32 %s201, 1
      %p205 = scmp.eq.s32.totalorder %s20, 1
      %p206 = scmp.ne.s32.totalorder %s201, %s203
      %p207 = scmp.eq.s32.totalorder %s20, 0
      %p208 = por %p206, %p207
      %p209 = scmp.ne.s32.totalorder %s201, %s203
      %p210 = scmp.eq.s32.totalorder %s25, 1
      %p211 = por %p209, %p210
      %p212 = scmp.ne.s32.totalorder %s203, %s204
      %p213 = scmp.eq.s32.totalorder %s25, 0
      %p214 = por %p212, %p213
      %p215 = scmp.ne.s32.totalorder %s203, %s204
      %p216 = scmp.eq.s32.totalorder %s26, 1
      %p217 = por %p215, %p216
      %p219 = scmp.ne.s32.totalorder %s204, %s218
      %p220 = scmp.eq.s32.totalorder %s26, 0
      %p221 = por %p219, %p220
      %s223 = sadd.s32 %s222, 1
      %p226 = scmp.eq.s32.totalorder %s20, 1
      %p227 = scmp.ne.s32.totalorder %s222, %s224
      %p228 = scmp.eq.s32.totalorder %s20, 0
      %p229 = por %p227, %p228
      %p230 = scmp.ne.s32.totalorder %s222, %s224
      %p231 = scmp.eq.s32.totalorder %s25, 1
      %p232 = por %p230, %p231
      %p233 = scmp.ne.s32.totalorder %s224, %s225
      %p234 = scmp.eq.s32.totalorder %s25, 0
      %p235 = por %p233, %p234
      %p236 = scmp.ne.s32.totalorder %s224, %s225
      %p237 = scmp.eq.s32.totalorder %s26, 1
      %p238 = por %p236, %p237
      %p240 = scmp.ne.s32.totalorder %s225, %s239
      %p241 = scmp.eq.s32.totalorder %s26, 0
      %p242 = por %p240, %p241
      %s243 = ssub.s32 %s20, %s27
      %p244 = scmp.eq.s32.totalorder %s243, 0
      %s246 = sadd.s32 %s245, 1
      %s247 = scalar_select %p244, %s245, %s246
      %p250 = pneg %p244
      %p251 = scmp.eq.s32.totalorder %s20, 1
      %p252 = por %p250, %p251
      %p253 = scmp.ne.s32.totalorder %s245, %s248
      %p254 = scmp.eq.s32.totalorder %s20, 0
      %p255 = por %p253, %p254
      %p256 = scmp.ne.s32.totalorder %s245, %s248
      %p257 = scmp.eq.s32.totalorder %s25, 1
      %p258 = por %p256, %p257
      %p259 = scmp.ne.s32.totalorder %s248, %s249
      %p260 = scmp.eq.s32.totalorder %s25, 0
      %p261 = por %p259, %p260
      %p262 = scmp.ne.s32.totalorder %s248, %s249
      %p263 = scmp.eq.s32.totalorder %s26, 1
      %p264 = por %p262, %p263
      %p266 = scmp.ne.s32.totalorder %s249, %s265
      %p267 = scmp.eq.s32.totalorder %s26, 0
      %p268 = por %p266, %p267
      %p269 = scmp.le.s32.totalorder 1, %s20
      %p270 = scmp.lt.s32.totalorder %s20, 3
      %p271 = pnand %p269, %p270
      %p272 = pneg %p271
      // Predicated region
      $region9: #{tpu_custom_call.1} parent=5 // pred_check
        _
      $region10: #{tpu_custom_call.1} parent=5 // pred_check_branch
        %274 = sbr.rel (%p271) target = $region12
      $region11: #{tpu_custom_call.1} parent=5 // pred_region
        %s275 = ssub.s32 %s20, 1
        // Predicated region
        $region13: #{tpu_custom_call.1} parent=11 // pred_check
          %p276 = pneg %p67
        $region14: #{tpu_custom_call.1} parent=11 // pred_check_branch
          %278 = sbr.rel (%p276) target = $region16
        $region15: #{tpu_custom_call.1} parent=11 // pred_region
          %s280 = ssub.s32 2304, 2304
          %281 = vsyncadd [#allocation4], %s280
          %s282 = sshll.u32 [#allocation3], 4
          %s283 = int_to_ptr.vmem [resolvable:$true] %s282
          %288 = dma.hbm_to_vmem [thread:$0]  %s1, 2304, %s283, [#allocation4], 256, 256, 16
        $region16: #{tpu_custom_call.1} parent=11 // pred_fallthru
          _
        // Predicated region
        $region17: #{tpu_custom_call.1} parent=11 // pred_check
          %p289 = pneg %p88
        $region18: #{tpu_custom_call.1} parent=11 // pred_check_branch
          %291 = sbr.rel (%p289) target = $region20
        $region19: #{tpu_custom_call.1} parent=11 // pred_region
          _
        $region20: #{tpu_custom_call.1} parent=11 // pred_fallthru
          _
        // Predicated region
        $region21: #{tpu_custom_call.1} parent=11 // pred_check
          %p292 = pneg %p109
        $region22: #{tpu_custom_call.1} parent=11 // pred_check_branch
          %294 = sbr.rel (%p292) target = $region24
        $region23: #{tpu_custom_call.1} parent=11 // pred_region
          _
        $region24: #{tpu_custom_call.1} parent=11 // pred_fallthru
          _
        // Predicated region
        $region25: #{tpu_custom_call.1} parent=11 // pred_check
          %p295 = pneg %p130
        $region26: #{tpu_custom_call.1} parent=11 // pred_check_branch
          %297 = sbr.rel (%p295) target = $region28
        $region27: #{tpu_custom_call.1} parent=11 // pred_region
          _
        $region28: #{tpu_custom_call.1} parent=11 // pred_fallthru
          _
        // Predicated region
        $region29: #{tpu_custom_call.1} parent=11 // pred_check
          %p298 = pneg %p151
        $region30: #{tpu_custom_call.1} parent=11 // pred_check_branch
          %300 = sbr.rel (%p298) target = $region32
        $region31: #{tpu_custom_call.1} parent=11 // pred_region
          _
        $region32: #{tpu_custom_call.1} parent=11 // pred_fallthru
          _
        // Predicated region
        $region33: #{tpu_custom_call.1} parent=11 // pred_check
          %p301 = pneg %p172
        $region34: #{tpu_custom_call.1} parent=11 // pred_check_branch
          %303 = sbr.rel (%p301) target = $region36
        $region35: #{tpu_custom_call.1} parent=11 // pred_region
          _
        $region36: #{tpu_custom_call.1} parent=11 // pred_fallthru
          _
        // Predicated region
        $region37: #{tpu_custom_call.1} parent=11 // pred_check
          %p304 = pneg %p193
        $region38: #{tpu_custom_call.1} parent=11 // pred_check_branch
          %306 = sbr.rel (%p304) target = $region40
        $region39: #{tpu_custom_call.1} parent=11 // pred_region
          _
        $region40: #{tpu_custom_call.1} parent=11 // pred_fallthru
          _
        // Predicated region
        $region41: #{tpu_custom_call.1} parent=11 // pred_check
          %p307 = pneg %p214
        $region42: #{tpu_custom_call.1} parent=11 // pred_check_branch
          %309 = sbr.rel (%p307) target = $region44
        $region43: #{tpu_custom_call.1} parent=11 // pred_region
          _
        $region44: #{tpu_custom_call.1} parent=11 // pred_fallthru
          _
        // Predicated region
        $region45: #{tpu_custom_call.1} parent=11 // pred_check
          %p310 = pneg %p235
        $region46: #{tpu_custom_call.1} parent=11 // pred_check_branch
          %312 = sbr.rel (%p310) target = $region48
        $region47: #{tpu_custom_call.1} parent=11 // pred_region
          _
        $region48: #{tpu_custom_call.1} parent=11 // pred_fallthru
          _
      $region12: #{tpu_custom_call.1} parent=5 // pred_fallthru
        _
      %p313 = scmp.lt.s32.totalorder %s20, 2
      // Predicated region
      $region49: #{tpu_custom_call.1} parent=5 // pred_check
        %p314 = pneg %p313
      $region50: #{tpu_custom_call.1} parent=5 // pred_check_branch
        %316 = sbr.rel (%p314) target = $region52
      $region51: #{tpu_custom_call.1} parent=5 // pred_region
        // Predicated region
        $region53: #{tpu_custom_call.1} parent=51 // pred_check
          %p317 = pneg %p40
        $region54: #{tpu_custom_call.1} parent=51 // pred_check_branch
          %319 = sbr.rel (%p317) target = $region56
        $region55: #{tpu_custom_call.1} parent=51 // pred_region
          %s320 = smul.u32 2, %s20
          %p321 = scmp.lt.s32.totalorder %s320, 3
          %s322 = scalar_select %p321, %s320, 3
          %s323 = smul.addr %s322, 8
          %s324 = scalar_lea.vmem %s0, %s323
          %s325 = smul.u32 2, %s20
        $region56: #{tpu_custom_call.1} parent=51 // pred_fallthru
          _
      $region52: #{tpu_custom_call.1} parent=5 // pred_fallthru
        _
      %p326 = scmp.le.s32.totalorder 1, %s20
      %p327 = scmp.lt.s32.totalorder %s20, 3
      %p328 = pnand %p326, %p327
      %p329 = pneg %p328
      // Predicated region
      $region57: #{tpu_custom_call.1} parent=5 // pred_check
        _
      $region58: #{tpu_custom_call.1} parent=5 // pred_check_branch
        %331 = sbr.rel (%p328) target = $region60
      $region59: #{tpu_custom_call.1} parent=5 // pred_region
        %s332 = ssub.s32 %s20, 1
        // Predicated region
        $region61: #{tpu_custom_call.1} parent=59 // pred_check
          %p333 = pneg %p67
        $region62: #{tpu_custom_call.1} parent=59 // pred_check_branch
          %335 = sbr.rel (%p333) target = $region64
        $region63: #{tpu_custom_call.1} parent=59 // pred_region
          %336 = dma.done [#allocation4], 2304
        $region64: #{tpu_custom_call.1} parent=59 // pred_fallthru
          _
        %s337 = smul.u32 2, %s25
        %p338 = scmp.lt.s32.totalorder %s337, 3
        %s339 = scalar_select %p338, %s337, 3
        %s340 = smul.addr %s339, 8
        %s341 = scalar_lea.vmem %s0, %s340
        %p342 = pneg %p46
        %p343 = pneg %p43
        %p344 = pneg %p67
        %p345 = pneg %p64
        %p346 = pneg %p88
        %p347 = pneg %p85
        %p348 = pneg %p109
        %p349 = pneg %p106
        %p350 = pneg %p130
        %p351 = pneg %p127
        %p352 = pneg %p151
        %p353 = pneg %p148
        %p354 = pneg %p172
        %p355 = pneg %p169
        %p356 = pneg %p193
        %p357 = pneg %p190
        %p358 = pneg %p214
        %p359 = pneg %p211
        %p360 = pneg %p235
        %p361 = pneg %p232
        %p362 = pneg %p261
        %p363 = pneg %p258
        %s364 = sand.u32 %s248, 1
        %s365 = scalar_lea.sflag [#allocation5], %s364
        %s366 = sand.u32 %s248, 1
        %s367 = smul.addr %s366, 16
        %s368 = scalar_lea.vmem [#allocation6], %s367
        %s369 = smul.u32 2, %s25
        %p370 = scmp.lt.s32.totalorder %s369, 3
        %s371 = scalar_select %p370, %s369, 3
        %s372 = smul.addr %s371, 8
        %s373 = scalar_lea.vmem %s0, %s372
        %s374 = smul.u32 2, %s25
        %s375 = smul.u32 2, %s25
        %v376 = vld [vmem:[#allocation3] sm:$0xff]
        %v377 = vld [vmem:[#allocation3 + $0x8] sm:$0xff]
        %v378 = vld [vmem:[#allocation3 + $0x10] sm:$0xff]
        %v379 = vld [vmem:[#allocation3 + $0x18] sm:$0xff]
        %v380 = vld [vmem:[#allocation3 + $0x20] sm:$0xff]
        %v381 = vld [vmem:[#allocation3 + $0x28] sm:$0xff]
        %v382 = vld [vmem:[#allocation3 + $0x30] sm:$0xff]
        %v383 = vld [vmem:[#allocation3 + $0x38] sm:$0xff]
        %v384 = vld [vmem:[#allocation3 + $0x40] sm:$0xff]
        %v385 = vld [vmem:[#allocation3 + $0x48] sm:$0xff]
        %v386 = vld [vmem:[#allocation3 + $0x50] sm:$0xff]
        %v387 = vld [vmem:[#allocation3 + $0x58] sm:$0xff]
        %v388 = vld [vmem:[#allocation3 + $0x60] sm:$0xff]
        %v389 = vld [vmem:[#allocation3 + $0x68] sm:$0xff]
        %v390 = vld [vmem:[#allocation3 + $0x70] sm:$0xff]
        %v391 = vld [vmem:[#allocation3 + $0x78] sm:$0xff]
        %v392 = vld [vmem:[#allocation3 + $0x80] sm:$0xff]
        %v393 = vld [vmem:[#allocation3 + $0x88] sm:$0xff]
        %v394 = vld [vmem:[%s9] sm:$0xff]
        %v395 = vld [vmem:[%s4] sm:$0xff]
        %v396 = vld [vmem:[%s5] sm:$0xff]
        %v397 = vld [vmem:[%s7] sm:$0xff]
        %v398 = vld [vmem:[%s8] sm:$0xff]
        %v399 = vld [vmem:[%s373] sm:$0xff]
        %v400 = vld [vmem:[%s373 + $0x8] sm:$0xff]
        %401 = vrot.lane.b32.xlu0 %v399, 17
        %v402 = vpop.permute.xlu0 %401
        %403 = vrot.lane.b32.xlu0 %v400, 17
        %v404 = vpop.permute.xlu0 %403
        %v405 = vlaneseq
        %v406 = vand.u32 %v405, 127
        %vm407 = vcmp.lt.s32.totalorder %v406, 17
        %v408 = vsel %vm407, %v402, %v404
        %v409 = vsel %vm407, %v404, %v402
        %410 = vrot.lane.b32.xlu0 %v399, 16
        %v411 = vpop.permute.xlu0 %410
        %412 = vrot.lane.b32.xlu0 %v400, 16
        %v413 = vpop.permute.xlu0 %412
        %vm414 = vcmp.lt.s32.totalorder %v406, 16
        %v415 = vsel %vm414, %v411, %v413
        %v416 = vsel %vm414, %v413, %v411
        %417 = vrot.lane.b32.xlu0 %v399, 15
        %v418 = vpop.permute.xlu0 %417
        %419 = vrot.lane.b32.xlu0 %v400, 15
        %v420 = vpop.permute.xlu0 %419
        %vm421 = vcmp.lt.s32.totalorder %v406, 15
        %v422 = vsel %vm421, %v418, %v420
        %v423 = vsel %vm421, %v420, %v418
        %424 = vrot.lane.b32.xlu0 %v399, 1
        %v425 = vpop.permute.xlu0 %424
        %426 = vrot.lane.b32.xlu0 %v400, 1
        %v427 = vpop.permute.xlu0 %426
        %vm428 = vcmp.lt.s32.totalorder %v406, 1
        %v429 = vsel %vm428, %v425, %v427
        %v430 = vsel %vm428, %v427, %v425
        %431 = vrot.lane.b32.xlu0 %v399, 127
        %v432 = vpop.permute.xlu0 %431
        %433 = vrot.lane.b32.xlu0 %v400, 127
        %v434 = vpop.permute.xlu0 %433
        %vm435 = vcmp.lt.s32.totalorder %v406, 127
        %v436 = vsel %vm435, %v432, %v434
        %v437 = vsel %vm435, %v434, %v432
        %438 = vrot.lane.b32.xlu0 %v399, 113
        %v439 = vpop.permute.xlu0 %438
        %440 = vrot.lane.b32.xlu0 %v400, 113
        %v441 = vpop.permute.xlu0 %440
        %vm442 = vcmp.lt.s32.totalorder %v406, 113
        %v443 = vsel %vm442, %v439, %v441
        %v444 = vsel %vm442, %v441, %v439
        %445 = vrot.lane.b32.xlu0 %v399, 112
        %v446 = vpop.permute.xlu0 %445
        %447 = vrot.lane.b32.xlu0 %v400, 112
        %v448 = vpop.permute.xlu0 %447
        %vm449 = vcmp.lt.s32.totalorder %v406, 112
        %v450 = vsel %vm449, %v446, %v448
        %v451 = vsel %vm449, %v448, %v446
        %452 = vrot.lane.b32.xlu0 %v399, 111
        %v453 = vpop.permute.xlu0 %452
        %454 = vrot.lane.b32.xlu0 %v400, 111
        %v455 = vpop.permute.xlu0 %454
        %vm456 = vcmp.lt.s32.totalorder %v406, 111
        %v457 = vsel %vm456, %v453, %v455
        %v458 = vsel %vm456, %v455, %v453
        %v459 = vmul.f32 %v409, %v376
        %v460 = vmul.f32 %v408, %v377
        %v461 = vmul.f32 %v416, %v378
        %v462 = vmul.f32 %v415, %v379
        %v463 = vmul.f32 %v423, %v380
        %v464 = vmul.f32 %v422, %v381
        %v465 = vmul.f32 %v430, %v382
        %v466 = vmul.f32 %v429, %v383
        %v467 = vmul.f32 %v399, %v384
        %v468 = vmul.f32 %v400, %v385
        %v469 = vmul.f32 %v436, %v386
        %v470 = vmul.f32 %v437, %v387
        %v471 = vmul.f32 %v443, %v388
        %v472 = vmul.f32 %v444, %v389
        %v473 = vmul.f32 %v450, %v390
        %v474 = vmul.f32 %v451, %v391
        %v475 = vmul.f32 %v457, %v392
        %v476 = vmul.f32 %v458, %v393
        %v477 = vld [vmem:[%s3] sm:$0xff]
        %vm478 = vcmask 588800
        %v480 = vsel %vm478, %v477, 0
        %482 = vmatprep.subr.mxu0 %v460
        %483 = vmatpush1.msra.mxu0 %v459
        %484 = vmatprep.subr.mxu0 %v462
        %485 = vmatpush1.msra.mxu0 %v461
        %486 = vmatprep.subr.mxu0 %v464
        %487 = vmatpush1.msra.mxu0 %v463
        %488 = vmatprep.subr.mxu0 %v466
        %489 = vmatpush1.msra.mxu0 %v465
        %490 = vmatprep.subr.mxu0 %v468
        %491 = vmatpush1.msra.mxu0 %v467
        %492 = vmatprep.subr.mxu0 %v470
        %493 = vmatpush1.msra.mxu0 %v469
        %494 = vmatprep.subr.mxu0 %v472
        %495 = vmatpush1.msra.mxu0 %v471
        %496 = vmatprep.subr.mxu0 %v474
        %497 = vmatpush1.msra.mxu0 %v473
        %498 = vmatprep.subr.mxu0 %v476
        %499 = vmatpush1.msra.mxu0 %v475
        %500 = vmatprep.subr.mxu0 0.0
        %501 = vmatpush1.msra.mxu0 0.0
        %502 = vmatprep.subr.mxu0 0.0
        %503 = vmatpush1.msra.mxu0 0.0
        %504 = vmatprep.subr.mxu0 0.0
        %505 = vmatpush1.msra.mxu0 0.0
        %506 = vmatprep.subr.mxu0 0.0
        %507 = vmatpush1.msra.mxu0 0.0
        %508 = vmatprep.subr.mxu0 0.0
        %509 = vmatpush1.msra.mxu0 0.0
        %510 = vmatprep.subr.mxu0 0.0
        %511 = vmatpush1.msra.mxu0 0.0
        %512 = vmatprep.subr.mxu0 0.0
        %513 = vmatpush1.msra.mxu0 0.0
        %514 = vmatprep.subr.mxu0 0.0
        %515 = vmatpush1.msra.mxu0 0.0
        %516 = vmatprep.subr.mxu0 0.0
        %517 = vmatpush1.msra.mxu0 0.0
        %518 = vmatprep.subr.mxu0 0.0
        %519 = vmatpush1.msra.mxu0 0.0
        %520 = vmatprep.subr.mxu0 0.0
        %521 = vmatpush1.msra.mxu0 0.0
        %522 = vmatprep.subr.mxu0 0.0
        %523 = vmatpush1.msra.mxu0 0.0
        %524 = vmatprep.subr.mxu0 0.0
        %525 = vmatpush1.msra.mxu0 0.0
        %526 = vmatprep.subr.mxu0 0.0
        %527 = vmatpush1.msra.mxu0 0.0
        %528 = vmatprep.subr.mxu0 0.0
        %529 = vmatpush1.msra.mxu0 0.0
        %530 = vmatprep.subr.mxu0 0.0
        %531 = vmatpush1.msra.mxu0 0.0
        %532 = vmatprep.subr.mxu0 0.0
        %533 = vmatpush1.msra.mxu0 0.0
        %534 = vmatprep.subr.mxu0 0.0
        %535 = vmatpush1.msra.mxu0 0.0
        %536 = vmatprep.subr.mxu0 0.0
        %537 = vmatpush1.msra.mxu0 0.0
        %538 = vmatprep.subr.mxu0 0.0
        %539 = vmatpush1.msra.mxu0 0.0
        %540 = vmatprep.subr.mxu0 0.0
        %541 = vmatpush1.msra.mxu0 0.0
        %542 = vmatprep.subr.mxu0 0.0
        %543 = vmatpush1.msra.mxu0 0.0
        %544 = vmatprep.subr.mxu0 0.0
        %545 = vmatpush1.msra.mxu0 0.0
        %546 = vmatprep.mubr.f32.mxu0 0.0
        %547 = vmatmul.mubr.f32.gmra.mrb[0].mxu0 %v480
        %v548 = vpop.f32.mrb[0].mxu0
        %v549 = vadd.f32 0.0, %v548
        %v550 = vpop.f32.mrb[0].mxu0
        %v551 = vadd.f32 0.0, %v550
        %552 = vdwg.mxu0
        %v553 = vadd.f32 %v549, %v551
        %554 = vadd.xlane.f32.xlu0 %v553
        %v555 = vpop.xlane.xlu0 %554
        %vm556 = vcmask 64512
        %v558 = vsel %vm556, %v394, 0
        %560 = vmatprep.subr.mxu0 0.0
        %561 = vmatpush1.msra.mxu0 %v555
        %562 = vmatprep.subr.mxu0 0.0
        %563 = vmatpush1.msra.mxu0 0.0
        %564 = vmatprep.subr.mxu0 0.0
        %565 = vmatpush1.msra.mxu0 0.0
        %566 = vmatprep.subr.mxu0 0.0
        %567 = vmatpush1.msra.mxu0 0.0
        %568 = vmatprep.subr.mxu0 0.0
        %569 = vmatpush1.msra.mxu0 0.0
        %570 = vmatprep.subr.mxu0 0.0
        %571 = vmatpush1.msra.mxu0 0.0
        %572 = vmatprep.subr.mxu0 0.0
        %573 = vmatpush1.msra.mxu0 0.0
        %574 = vmatprep.subr.mxu0 0.0
        %575 = vmatpush1.msra.mxu0 0.0
        %576 = vmatprep.subr.mxu0 0.0
        %577 = vmatpush1.msra.mxu0 0.0
        %578 = vmatprep.subr.mxu0 0.0
        %579 = vmatpush1.msra.mxu0 0.0
        %580 = vmatprep.subr.mxu0 0.0
        %581 = vmatpush1.msra.mxu0 0.0
        %582 = vmatprep.subr.mxu0 0.0
        %583 = vmatpush1.msra.mxu0 0.0
        %584 = vmatprep.subr.mxu0 0.0
        %585 = vmatpush1.msra.mxu0 0.0
        %586 = vmatprep.subr.mxu0 0.0
        %587 = vmatpush1.msra.mxu0 0.0
        %588 = vmatprep.subr.mxu0 0.0
        %589 = vmatpush1.msra.mxu0 0.0
        %590 = vmatprep.subr.mxu0 0.0
        %591 = vmatpush1.msra.mxu0 0.0
        %592 = vmatprep.subr.mxu0 0.0
        %593 = vmatpush1.msra.mxu0 0.0
        %594 = vmatprep.subr.mxu0 0.0
        %595 = vmatpush1.msra.mxu0 0.0
        %596 = vmatprep.subr.mxu0 0.0
        %597 = vmatpush1.msra.mxu0 0.0
        %598 = vmatprep.subr.mxu0 0.0
        %599 = vmatpush1.msra.mxu0 0.0
        %600 = vmatprep.subr.mxu0 0.0
        %601 = vmatpush1.msra.mxu0 0.0
        %602 = vmatprep.subr.mxu0 0.0
        %603 = vmatpush1.msra.mxu0 0.0
        %604 = vmatprep.subr.mxu0 0.0
        %605 = vmatpush1.msra.mxu0 0.0
        %606 = vmatprep.subr.mxu0 0.0
        %607 = vmatpush1.msra.mxu0 0.0
        %608 = vmatprep.subr.mxu0 0.0
        %609 = vmatpush1.msra.mxu0 0.0
        %610 = vmatprep.subr.mxu0 0.0
        %611 = vmatpush1.msra.mxu0 0.0
        %612 = vmatprep.subr.mxu0 0.0
        %613 = vmatpush1.msra.mxu0 0.0
        %614 = vmatprep.subr.mxu0 0.0
        %615 = vmatpush1.msra.mxu0 0.0
        %616 = vmatprep.subr.mxu0 0.0
        %617 = vmatpush1.msra.mxu0 0.0
        %618 = vmatprep.subr.mxu0 0.0
        %619 = vmatpush1.msra.mxu0 0.0
        %620 = vmatprep.subr.mxu0 0.0
        %621 = vmatpush1.msra.mxu0 0.0
        %622 = vmatprep.subr.mxu0 0.0
        %623 = vmatpush1.msra.mxu0 0.0
        %624 = vmatprep.mubr.f32.mxu0 0.0
        %625 = vmatmul.mubr.f32.gmra.mrb[0].mxu0 %v558
        %v626 = vpop.f32.mrb[0].mxu0
        %v627 = vadd.f32 0.0, %v626
        %v628 = vpop.f32.mrb[0].mxu0
        %629 = vdwg.mxu0
        %631 = vset.pattern.permute.xlu0 0
        %632 = vperm.xlu0 %631, %v627
        %v633 = vpop.permute.xlu0 %632
        %v635 = vsub.f32 %v549, %v633
        %v636 = vsub.f32 %v551, %v633
        %v637 = vmul.f32 %v635, %v635
        %v638 = vmul.f32 %v636, %v636
        %v639 = vadd.f32 %v637, %v638
        %640 = vadd.xlane.f32.xlu0 %v639
        %v641 = vpop.xlane.xlu0 %640
        %642 = vmatprep.subr.mxu0 0.0
        %643 = vmatpush1.msra.mxu0 %v641
        %644 = vmatprep.subr.mxu0 0.0
        %645 = vmatpush1.msra.mxu0 0.0
        %646 = vmatprep.subr.mxu0 0.0
        %647 = vmatpush1.msra.mxu0 0.0
        %648 = vmatprep.subr.mxu0 0.0
        %649 = vmatpush1.msra.mxu0 0.0
        %650 = vmatprep.subr.mxu0 0.0
        %651 = vmatpush1.msra.mxu0 0.0
        %652 = vmatprep.subr.mxu0 0.0
        %653 = vmatpush1.msra.mxu0 0.0
        %654 = vmatprep.subr.mxu0 0.0
        %655 = vmatpush1.msra.mxu0 0.0
        %656 = vmatprep.subr.mxu0 0.0
        %657 = vmatpush1.msra.mxu0 0.0
        %658 = vmatprep.subr.mxu0 0.0
        %659 = vmatpush1.msra.mxu0 0.0
        %660 = vmatprep.subr.mxu0 0.0
        %661 = vmatpush1.msra.mxu0 0.0
        %662 = vmatprep.subr.mxu0 0.0
        %663 = vmatpush1.msra.mxu0 0.0
        %664 = vmatprep.subr.mxu0 0.0
        %665 = vmatpush1.msra.mxu0 0.0
        %666 = vmatprep.subr.mxu0 0.0
        %667 = vmatpush1.msra.mxu0 0.0
        %668 = vmatprep.subr.mxu0 0.0
        %669 = vmatpush1.msra.mxu0 0.0
        %670 = vmatprep.subr.mxu0 0.0
        %671 = vmatpush1.msra.mxu0 0.0
        %672 = vmatprep.subr.mxu0 0.0
        %673 = vmatpush1.msra.mxu0 0.0
        %674 = vmatprep.subr.mxu0 0.0
        %675 = vmatpush1.msra.mxu0 0.0
        %676 = vmatprep.subr.mxu0 0.0
        %677 = vmatpush1.msra.mxu0 0.0
        %678 = vmatprep.subr.mxu0 0.0
        %679 = vmatpush1.msra.mxu0 0.0
        %680 = vmatprep.subr.mxu0 0.0
        %681 = vmatpush1.msra.mxu0 0.0
        %682 = vmatprep.subr.mxu0 0.0
        %683 = vmatpush1.msra.mxu0 0.0
        %684 = vmatprep.subr.mxu0 0.0
        %685 = vmatpush1.msra.mxu0 0.0
        %686 = vmatprep.subr.mxu0 0.0
        %687 = vmatpush1.msra.mxu0 0.0
        %688 = vmatprep.subr.mxu0 0.0
        %689 = vmatpush1.msra.mxu0 0.0
        %690 = vmatprep.subr.mxu0 0.0
        %691 = vmatpush1.msra.mxu0 0.0
        %692 = vmatprep.subr.mxu0 0.0
        %693 = vmatpush1.msra.mxu0 0.0
        %694 = vmatprep.subr.mxu0 0.0
        %695 = vmatpush1.msra.mxu0 0.0
        %696 = vmatprep.subr.mxu0 0.0
        %697 = vmatpush1.msra.mxu0 0.0
        %698 = vmatprep.subr.mxu0 0.0
        %699 = vmatpush1.msra.mxu0 0.0
        %700 = vmatprep.subr.mxu0 0.0
        %701 = vmatpush1.msra.mxu0 0.0
        %702 = vmatprep.subr.mxu0 0.0
        %703 = vmatpush1.msra.mxu0 0.0
        %704 = vmatprep.subr.mxu0 0.0
        %705 = vmatpush1.msra.mxu0 0.0
        %706 = vmatprep.mubr.f32.mxu0 0.0
        %707 = vmatmul.mubr.f32.gmra.mrb[0].mxu0 %v558
        %v708 = vpop.f32.mrb[0].mxu0
        %v709 = vadd.f32 0.0, %v708
        %v710 = vpop.f32.mrb[0].mxu0
        %711 = vdwg.mxu0
        %v712 = vadd.f32 %v709, 1e-05
        %v713 = vrsqrt.pop %v712
        %v714 = vmul.f32 %v713, %v395
        %716 = vset.pattern.permute.xlu0 0
        %717 = vperm.xlu0 %716, %v714
        %v718 = vpop.permute.xlu0 %717
        %v720 = vmul.f32 %v635, %v718
        %v721 = vmul.f32 %v636, %v718
        %723 = vset.pattern.permute.xlu0 0
        %724 = vperm.xlu0 %723, %v396
        %v725 = vpop.permute.xlu0 %724
        %v727 = vadd.f32 %v720, %v725
        %v728 = vadd.f32 %v721, %v725
        %v729 = vmax.f32 %v727, 0.0
        %v730 = vmax.f32 %v728, 0.0
        %731 = vst [vmem:[#allocation2] sm:$0xff] %v729
        %732 = vst [vmem:[#allocation2 + $0x8] sm:$0xff] %v730
        %v733 = vld [vmem:[#allocation2] sm:$0xff]
        %v734 = vld [vmem:[#allocation2 + $0x8] sm:$0xff]
        %735 = vrot.lane.b32.xlu0 %v733, 17
        %v736 = vpop.permute.xlu0 %735
        %737 = vrot.lane.b32.xlu0 %v734, 17
        %v738 = vpop.permute.xlu0 %737
        %v739 = vsel %vm407, %v736, %v738
        %v740 = vsel %vm407, %v738, %v736
        %741 = vrot.lane.b32.xlu0 %v733, 16
        %v742 = vpop.permute.xlu0 %741
        %743 = vrot.lane.b32.xlu0 %v734, 16
        %v744 = vpop.permute.xlu0 %743
        %v745 = vsel %vm414, %v742, %v744
        %v746 = vsel %vm414, %v744, %v742
        %747 = vrot.lane.b32.xlu0 %v733, 15
        %v748 = vpop.permute.xlu0 %747
        %749 = vrot.lane.b32.xlu0 %v734, 15
        %v750 = vpop.permute.xlu0 %749
        %v751 = vsel %vm421, %v748, %v750
        %v752 = vsel %vm421, %v750, %v748
        %753 = vrot.lane.b32.xlu0 %v733, 1
        %v754 = vpop.permute.xlu0 %753
        %755 = vrot.lane.b32.xlu0 %v734, 1
        %v756 = vpop.permute.xlu0 %755
        %v757 = vsel %vm428, %v754, %v756
        %v758 = vsel %vm428, %v756, %v754
        %759 = vrot.lane.b32.xlu0 %v733, 127
        %v760 = vpop.permute.xlu0 %759
        %761 = vrot.lane.b32.xlu0 %v734, 127
        %v762 = vpop.permute.xlu0 %761
        %v763 = vsel %vm435, %v760, %v762
        %v764 = vsel %vm435, %v762, %v760
        %765 = vrot.lane.b32.xlu0 %v733, 113
        %v766 = vpop.permute.xlu0 %765
        %767 = vrot.lane.b32.xlu0 %v734, 113
        %v768 = vpop.permute.xlu0 %767
        %v769 = vsel %vm442, %v766, %v768
        %v770 = vsel %vm442, %v768, %v766
        %771 = vrot.lane.b32.xlu0 %v733, 112
        %v772 = vpop.permute.xlu0 %771
        %773 = vrot.lane.b32.xlu0 %v734, 112
        %v774 = vpop.permute.xlu0 %773
        %v775 = vsel %vm449, %v772, %v774
        %v776 = vsel %vm449, %v774, %v772
        %777 = vrot.lane.b32.xlu0 %v733, 111
        %v778 = vpop.permute.xlu0 %777
        %779 = vrot.lane.b32.xlu0 %v734, 111
        %v780 = vpop.permute.xlu0 %779
        %v781 = vsel %vm456, %v778, %v780
        %v782 = vsel %vm456, %v780, %v778
        %v783 = vmul.f32 %v740, %v376
        %v784 = vmul.f32 %v739, %v377
        %v785 = vmul.f32 %v746, %v378
        %v786 = vmul.f32 %v745, %v379
        %v787 = vmul.f32 %v752, %v380
        %v788 = vmul.f32 %v751, %v381
        %v789 = vmul.f32 %v758, %v382
        %v790 = vmul.f32 %v757, %v383
        %v791 = vmul.f32 %v733, %v384
        %v792 = vmul.f32 %v734, %v385
        %v793 = vmul.f32 %v763, %v386
        %v794 = vmul.f32 %v764, %v387
        %v795 = vmul.f32 %v769, %v388
        %v796 = vmul.f32 %v770, %v389
        %v797 = vmul.f32 %v775, %v390
        %v798 = vmul.f32 %v776, %v391
        %v799 = vmul.f32 %v781, %v392
        %v800 = vmul.f32 %v782, %v393
        %v801 = vld [vmem:[%s6] sm:$0xff]
        %v803 = vsel %vm478, %v801, 0
        %805 = vmatprep.subr.mxu0 %v784
        %806 = vmatpush1.msra.mxu0 %v783
        %807 = vmatprep.subr.mxu0 %v786
        %808 = vmatpush1.msra.mxu0 %v785
        %809 = vmatprep.subr.mxu0 %v788
        %810 = vmatpush1.msra.mxu0 %v787
        %811 = vmatprep.subr.mxu0 %v790
        %812 = vmatpush1.msra.mxu0 %v789
        %813 = vmatprep.subr.mxu0 %v792
        %814 = vmatpush1.msra.mxu0 %v791
        %815 = vmatprep.subr.mxu0 %v794
        %816 = vmatpush1.msra.mxu0 %v793
        %817 = vmatprep.subr.mxu0 %v796
        %818 = vmatpush1.msra.mxu0 %v795
        %819 = vmatprep.subr.mxu0 %v798
        %820 = vmatpush1.msra.mxu0 %v797
        %821 = vmatprep.subr.mxu0 %v800
        %822 = vmatpush1.msra.mxu0 %v799
        %823 = vmatprep.subr.mxu0 0.0
        %824 = vmatpush1.msra.mxu0 0.0
        %825 = vmatprep.subr.mxu0 0.0
        %826 = vmatpush1.msra.mxu0 0.0
        %827 = vmatprep.subr.mxu0 0.0
        %828 = vmatpush1.msra.mxu0 0.0
        %829 = vmatprep.subr.mxu0 0.0
        %830 = vmatpush1.msra.mxu0 0.0
        %831 = vmatprep.subr.mxu0 0.0
        %832 = vmatpush1.msra.mxu0 0.0
        %833 = vmatprep.subr.mxu0 0.0
        %834 = vmatpush1.msra.mxu0 0.0
        %835 = vmatprep.subr.mxu0 0.0
        %836 = vmatpush1.msra.mxu0 0.0
        %837 = vmatprep.subr.mxu0 0.0
        %838 = vmatpush1.msra.mxu0 0.0
        %839 = vmatprep.subr.mxu0 0.0
        %840 = vmatpush1.msra.mxu0 0.0
        %841 = vmatprep.subr.mxu0 0.0
        %842 = vmatpush1.msra.mxu0 0.0
        %843 = vmatprep.subr.mxu0 0.0
        %844 = vmatpush1.msra.mxu0 0.0
        %845 = vmatprep.subr.mxu0 0.0
        %846 = vmatpush1.msra.mxu0 0.0
        %847 = vmatprep.subr.mxu0 0.0
        %848 = vmatpush1.msra.mxu0 0.0
        %849 = vmatprep.subr.mxu0 0.0
        %850 = vmatpush1.msra.mxu0 0.0
        %851 = vmatprep.subr.mxu0 0.0
        %852 = vmatpush1.msra.mxu0 0.0
        %853 = vmatprep.subr.mxu0 0.0
        %854 = vmatpush1.msra.mxu0 0.0
        %855 = vmatprep.subr.mxu0 0.0
        %856 = vmatpush1.msra.mxu0 0.0
        %857 = vmatprep.subr.mxu0 0.0
        %858 = vmatpush1.msra.mxu0 0.0
        %859 = vmatprep.subr.mxu0 0.0
        %860 = vmatpush1.msra.mxu0 0.0
        %861 = vmatprep.subr.mxu0 0.0
        %862 = vmatpush1.msra.mxu0 0.0
        %863 = vmatprep.subr.mxu0 0.0
        %864 = vmatpush1.msra.mxu0 0.0
        %865 = vmatprep.subr.mxu0 0.0
        %866 = vmatpush1.msra.mxu0 0.0
        %867 = vmatprep.subr.mxu0 0.0
        %868 = vmatpush1.msra.mxu0 0.0
        %869 = vmatprep.mubr.f32.mxu0 0.0
        %870 = vmatmul.mubr.f32.gmra.mrb[0].mxu0 %v803
        %v871 = vpop.f32.mrb[0].mxu0
        %v872 = vadd.f32 0.0, %v871
        %v873 = vpop.f32.mrb[0].mxu0
        %v874 = vadd.f32 0.0, %v873
        %875 = vdwg.mxu0
        %v876 = vadd.f32 %v872, %v874
        %877 = vadd.xlane.f32.xlu0 %v876
        %v878 = vpop.xlane.xlu0 %877
        %879 = vmatprep.subr.mxu0 0.0
        %880 = vmatpush1.msra.mxu0 %v878
        %881 = vmatprep.subr.mxu0 0.0
        %882 = vmatpush1.msra.mxu0 0.0
        %883 = vmatprep.subr.mxu0 0.0
        %884 = vmatpush1.msra.mxu0 0.0
        %885 = vmatprep.subr.mxu0 0.0
        %886 = vmatpush1.msra.mxu0 0.0
        %887 = vmatprep.subr.mxu0 0.0
        %888 = vmatpush1.msra.mxu0 0.0
        %889 = vmatprep.subr.mxu0 0.0
        %890 = vmatpush1.msra.mxu0 0.0
        %891 = vmatprep.subr.mxu0 0.0
        %892 = vmatpush1.msra.mxu0 0.0
        %893 = vmatprep.subr.mxu0 0.0
        %894 = vmatpush1.msra.mxu0 0.0
        %895 = vmatprep.subr.mxu0 0.0
        %896 = vmatpush1.msra.mxu0 0.0
        %897 = vmatprep.subr.mxu0 0.0
        %898 = vmatpush1.msra.mxu0 0.0
        %899 = vmatprep.subr.mxu0 0.0
        %900 = vmatpush1.msra.mxu0 0.0
        %901 = vmatprep.subr.mxu0 0.0
        %902 = vmatpush1.msra.mxu0 0.0
        %903 = vmatprep.subr.mxu0 0.0
        %904 = vmatpush1.msra.mxu0 0.0
        %905 = vmatprep.subr.mxu0 0.0
        %906 = vmatpush1.msra.mxu0 0.0
        %907 = vmatprep.subr.mxu0 0.0
        %908 = vmatpush1.msra.mxu0 0.0
        %909 = vmatprep.subr.mxu0 0.0
        %910 = vmatpush1.msra.mxu0 0.0
        %911 = vmatprep.subr.mxu0 0.0
        %912 = vmatpush1.msra.mxu0 0.0
        %913 = vmatprep.subr.mxu0 0.0
        %914 = vmatpush1.msra.mxu0 0.0
        %915 = vmatprep.subr.mxu0 0.0
        %916 = vmatpush1.msra.mxu0 0.0
        %917 = vmatprep.subr.mxu0 0.0
        %918 = vmatpush1.msra.mxu0 0.0
        %919 = vmatprep.subr.mxu0 0.0
        %920 = vmatpush1.msra.mxu0 0.0
        %921 = vmatprep.subr.mxu0 0.0
        %922 = vmatpush1.msra.mxu0 0.0
        %923 = vmatprep.subr.mxu0 0.0
        %924 = vmatpush1.msra.mxu0 0.0
        %925 = vmatprep.subr.mxu0 0.0
        %926 = vmatpush1.msra.mxu0 0.0
        %927 = vmatprep.subr.mxu0 0.0
        %928 = vmatpush1.msra.mxu0 0.0
        %929 = vmatprep.subr.mxu0 0.0
        %930 = vmatpush1.msra.mxu0 0.0
        %931 = vmatprep.subr.mxu0 0.0
        %932 = vmatpush1.msra.mxu0 0.0
        %933 = vmatprep.subr.mxu0 0.0
        %934 = vmatpush1.msra.mxu0 0.0
        %935 = vmatprep.subr.mxu0 0.0
        %936 = vmatpush1.msra.mxu0 0.0
        %937 = vmatprep.subr.mxu0 0.0
        %938 = vmatpush1.msra.mxu0 0.0
        %939 = vmatprep.subr.mxu0 0.0
        %940 = vmatpush1.msra.mxu0 0.0
        %941 = vmatprep.subr.mxu0 0.0
        %942 = vmatpush1.msra.mxu0 0.0
        %943 = vmatprep.mubr.f32.mxu0 0.0
        %944 = vmatmul.mubr.f32.gmra.mrb[0].mxu0 %v558
        %v945 = vpop.f32.mrb[0].mxu0
        %v946 = vadd.f32 0.0, %v945
        %v947 = vpop.f32.mrb[0].mxu0
        %948 = vdwg.mxu0
        %950 = vset.pattern.permute.xlu0 0
        %951 = vperm.xlu0 %950, %v946
        %v952 = vpop.permute.xlu0 %951
        %v954 = vsub.f32 %v872, %v952
        %v955 = vsub.f32 %v874, %v952
        %v956 = vmul.f32 %v954, %v954
        %v957 = vmul.f32 %v955, %v955
        %v958 = vadd.f32 %v956, %v957
        %959 = vadd.xlane.f32.xlu0 %v958
        %v960 = vpop.xlane.xlu0 %959
        %961 = vmatprep.subr.mxu0 0.0
        %962 = vmatpush1.msra.mxu0 %v960
        %963 = vmatprep.subr.mxu0 0.0
        %964 = vmatpush1.msra.mxu0 0.0
        %965 = vmatprep.subr.mxu0 0.0
        %966 = vmatpush1.msra.mxu0 0.0
        %967 = vmatprep.subr.mxu0 0.0
        %968 = vmatpush1.msra.mxu0 0.0
        %969 = vmatprep.subr.mxu0 0.0
        %970 = vmatpush1.msra.mxu0 0.0
        %971 = vmatprep.subr.mxu0 0.0
        %972 = vmatpush1.msra.mxu0 0.0
        %973 = vmatprep.subr.mxu0 0.0
        %974 = vmatpush1.msra.mxu0 0.0
        %975 = vmatprep.subr.mxu0 0.0
        %976 = vmatpush1.msra.mxu0 0.0
        %977 = vmatprep.subr.mxu0 0.0
        %978 = vmatpush1.msra.mxu0 0.0
        %979 = vmatprep.subr.mxu0 0.0
        %980 = vmatpush1.msra.mxu0 0.0
        %981 = vmatprep.subr.mxu0 0.0
        %982 = vmatpush1.msra.mxu0 0.0
        %983 = vmatprep.subr.mxu0 0.0
        %984 = vmatpush1.msra.mxu0 0.0
        %985 = vmatprep.subr.mxu0 0.0
        %986 = vmatpush1.msra.mxu0 0.0
        %987 = vmatprep.subr.mxu0 0.0
        %988 = vmatpush1.msra.mxu0 0.0
        %989 = vmatprep.subr.mxu0 0.0
        %990 = vmatpush1.msra.mxu0 0.0
        %991 = vmatprep.subr.mxu0 0.0
        %992 = vmatpush1.msra.mxu0 0.0
        %993 = vmatprep.subr.mxu0 0.0
        %994 = vmatpush1.msra.mxu0 0.0
        %995 = vmatprep.subr.mxu0 0.0
        %996 = vmatpush1.msra.mxu0 0.0
        %997 = vmatprep.subr.mxu0 0.0
        %998 = vmatpush1.msra.mxu0 0.0
        %999 = vmatprep.subr.mxu0 0.0
        %1000 = vmatpush1.msra.mxu0 0.0
        %1001 = vmatprep.subr.mxu0 0.0
        %1002 = vmatpush1.msra.mxu0 0.0
        %1003 = vmatprep.subr.mxu0 0.0
        %1004 = vmatpush1.msra.mxu0 0.0
        %1005 = vmatprep.subr.mxu0 0.0
        %1006 = vmatpush1.msra.mxu0 0.0
        %1007 = vmatprep.subr.mxu0 0.0
        %1008 = vmatpush1.msra.mxu0 0.0
        %1009 = vmatprep.subr.mxu0 0.0
        %1010 = vmatpush1.msra.mxu0 0.0
        %1011 = vmatprep.subr.mxu0 0.0
        %1012 = vmatpush1.msra.mxu0 0.0
        %1013 = vmatprep.subr.mxu0 0.0
        %1014 = vmatpush1.msra.mxu0 0.0
        %1015 = vmatprep.subr.mxu0 0.0
        %1016 = vmatpush1.msra.mxu0 0.0
        %1017 = vmatprep.subr.mxu0 0.0
        %1018 = vmatpush1.msra.mxu0 0.0
        %1019 = vmatprep.subr.mxu0 0.0
        %1020 = vmatpush1.msra.mxu0 0.0
        %1021 = vmatprep.subr.mxu0 0.0
        %1022 = vmatpush1.msra.mxu0 0.0
        %1023 = vmatprep.subr.mxu0 0.0
        %1024 = vmatpush1.msra.mxu0 0.0
        %1025 = vmatprep.mubr.f32.mxu0 0.0
        %1026 = vmatmul.mubr.f32.gmra.mrb[0].mxu0 %v558
        %v1027 = vpop.f32.mrb[0].mxu0
        %v1028 = vadd.f32 0.0, %v1027
        %v1029 = vpop.f32.mrb[0].mxu0
        %1030 = vdwg.mxu0
        %v1031 = vadd.f32 %v1028, 1e-05
        %v1032 = vrsqrt.pop %v1031
        %v1033 = vmul.f32 %v1032, %v397
        %1035 = vset.pattern.permute.xlu0 0
        %1036 = vperm.xlu0 %1035, %v1033
        %v1037 = vpop.permute.xlu0 %1036
        %v1039 = vmul.f32 %v954, %v1037
        %v1040 = vmul.f32 %v955, %v1037
        %1042 = vset.pattern.permute.xlu0 0
        %1043 = vperm.xlu0 %1042, %v398
        %v1044 = vpop.permute.xlu0 %1043
        %v1046 = vadd.f32 %v1039, %v1044
        %v1047 = vadd.f32 %v1040, %v1044
        %v1048 = vld [vmem:[%s373] sm:$0xff]
        %v1049 = vld [vmem:[%s373 + $0x8] sm:$0xff]
        %v1050 = vadd.f32 %v1046, %v1048
        %v1051 = vadd.f32 %v1047, %v1049
        %v1052 = vmax.f32 %v1050, 0.0
        %v1053 = vmax.f32 %v1051, 0.0
        %1054 = vst [vmem:[%s368] sm:$0xff] %v1052
        %1055 = vst [vmem:[%s368 + $0x8] sm:$0xff] %v1053
        %s1056 = sand.u32 %s248, 1
        %s1057 = scalar_lea.sflag [#allocation5], %s1056
        %s1058 = sand.u32 %s248, 1
        %s1059 = smul.addr %s1058, 16
        %s1060 = scalar_lea.vmem [#allocation6], %s1059
        // Predicated region
        $region65: #{tpu_custom_call.1} parent=59 // pred_check
          %p1061 = pneg %p258
        $region66: #{tpu_custom_call.1} parent=59 // pred_check_branch
          %1063 = sbr.rel (%p1061) target = $region68
        $region67: #{tpu_custom_call.1} parent=59 // pred_region
          %s1064 = smul.u32 2, %s25
          %s1066 = ssub.s32 256, 256
          %1067 = vsyncadd %s1057, %s1066
          %s1068 = smul.addr %s1064, 128
          %s1069 = scalar_lea.hbm %s10, %s1068
          %s1071 = sshll.u32 %s1060, 4
          %s1072 = int_to_ptr.vmem [resolvable:$true] %s1071
          %1074 = dma.vmem_to_hbm [thread:$0]  %s1072, 256, %s1069, %s1057
        $region68: #{tpu_custom_call.1} parent=59 // pred_fallthru
          _
      $region60: #{tpu_custom_call.1} parent=5 // pred_fallthru
        _
      %p1075 = scmp.le.s32.totalorder 2, %s20
      // Predicated region
      $region69: #{tpu_custom_call.1} parent=5 // pred_check
        %p1076 = pneg %p1075
      $region70: #{tpu_custom_call.1} parent=5 // pred_check_branch
        %1078 = sbr.rel (%p1076) target = $region72
      $region71: #{tpu_custom_call.1} parent=5 // pred_region
        %s1079 = ssub.s32 %s20, 2
        // Predicated region
        $region73: #{tpu_custom_call.1} parent=71 // pred_check
          %p1080 = pneg %p264
        $region74: #{tpu_custom_call.1} parent=71 // pred_check_branch
          %1082 = sbr.rel (%p1080) target = $region76
        $region75: #{tpu_custom_call.1} parent=71 // pred_region
          %s1083 = sand.u32 %s249, 1
          %s1084 = scalar_lea.sflag [#allocation5], %s1083
          %s1085 = sand.u32 %s249, 1
          %s1086 = smul.addr %s1085, 16
          %s1087 = scalar_lea.vmem [#allocation6], %s1086
          %1088 = dma.done %s1084, 256
        $region76: #{tpu_custom_call.1} parent=71 // pred_fallthru
          _
      $region72: #{tpu_custom_call.1} parent=5 // pred_fallthru
        _
    $region6: #{tpu_custom_call.1} parent=1 // loop_footer
      %s24 = sadd.s32 1, %s20
    $region7: #{tpu_custom_call.1} parent=1 // loop_footer_branch
      %19 = sbr.rel target = $region3
    $region8: #{tpu_custom_call.1} parent=1 // loop_exit
      _
    %1089 = vsyncpa [#allocation4], 1
    %s1090 = scalar_lea.sflag [#allocation4], 1
    %1091 = vsyncpa %s1090, 1
    %1092 = vsyncpa [#allocation5], 1
    %s1093 = scalar_lea.sflag [#allocation5], 1
    %1094 = vsyncpa %s1093, 1

</llo_original>
